<compile_context>
chip_gen: v5e
topology: v5e:2x2
jax: 0.10.0
libtpu: 0.0.40
codegen_flags: <defaults>
</compile_context>

<pallas_src>
import functools

import jax
import jax.numpy as jnp
from jax import lax
from jax.experimental import pallas as pl
from jax.experimental.pallas import tpu as pltpu


# ---------------------------------------------------------------------------
# Fused Pallas kernel (single invocation, everything resident in VMEM)
# ---------------------------------------------------------------------------

def fused_model_kernel(x_ref, lens_ref, wc_ref, bc_ref, wh_ref,
                       w1_ref, b1_ref, w2_ref, b2_ref,
                       o_ref, gx_sc, r_sc, *, T, B, H):
    """Whole model forward.

    x_ref   : (T*B, d_in)  time-major flattened input (row = t*B + b)
    lens_ref: (B, 1)       valid sequence length per (padded) batch row, f32
    wc_ref  : (d_in, 8H)   folded input projection, interleaved gate layout
                           (i_f,i_b,f_f,f_b,o_f,o_b,g_f,g_b)
    bc_ref  : (1, 8H)      folded gate bias, same layout
    wh_ref  : (2H, 8H)     block-diagonal recurrent weights, same layout
    w1_ref  : (2H, d_fc)   fc_1 weight (rows = [fwd H | bwd H])
    b1_ref  : (1, d_fc)
    w2_ref  : (d_fc, Npad) fc_2 weight, zero-padded to lane-dense width
    b2_ref  : (1, Npad)
    o_ref   : (T*B, Npad)
    gx_sc   : (T*B, 8H)    precomputed x-gates for both directions
    r_sc    : (T*B, 2H)    LSTM outputs ([fwd | bwd] along lanes)
    """
    # (1) Folded input projection for both directions: one big MXU matmul.
    gx_sc[...] = (jnp.dot(x_ref[...], wc_ref[...],
                          preferred_element_type=jnp.float32) + bc_ref[...])

    # Lane-pattern masks (hoisted out of the time loop).
    # H is a power of two (asserted in the wrapper), so block parity == bit H.
    lane8 = lax.broadcasted_iota(jnp.int32, (B, 8 * H), 1)
    fwd8 = (lane8 & H) == 0                      # True on forward gate lanes
    lane2 = lax.broadcasted_iota(jnp.int32, (B, 2 * H), 1)
    fwd2 = lane2 < H                             # True on forward state lanes

    lens = lens_ref[...]                          # (B, 1) f32
    h_cat = jnp.zeros((B, 2 * H), jnp.float32)    # [h_f | h_b]
    c_cat = jnp.zeros((B, 2 * H), jnp.float32)    # [c_f | c_b]

    # (2) Statically unrolled time loop; both directions advance each step.
    #     Only ONE (B,2H)@(2H,8H) matmul sits on the serial path per step.
    for s in range(T):
        t = s                                     # forward time index
        r = T - 1 - s                             # backward walks time in reverse

        gx_t = gx_sc[t * B:(t + 1) * B, :]        # (B, 8H), forward time row
        gx_r = gx_sc[r * B:(r + 1) * B, :]        # (B, 8H), backward time row
        gates_x = jnp.where(fwd8, gx_t, gx_r)     # pick per-direction x-gates

        gates = gates_x + jnp.dot(h_cat, wh_ref[...],
                                  preferred_element_type=jnp.float32)

        sig = jax.nn.sigmoid(gates[:, :6 * H])    # one sigmoid: i,f,o both dirs
        g_cat = jnp.tanh(gates[:, 6 * H:])        # one tanh: g both dirs
        i_cat = sig[:, 0 * H:2 * H]
        f_cat = sig[:, 2 * H:4 * H]
        o_cat = sig[:, 4 * H:6 * H]

        c_new = f_cat * c_cat + i_cat * g_cat
        h_new = o_cat * jnp.tanh(c_new)

        # per-step validity mask built in-kernel (forward lanes vs backward lanes)
        thresh = jnp.where(fwd2, float(t), float(r))   # (B, 2H) f32
        mask = lens > thresh                            # (B, 2H) bool

        out = jnp.where(mask, h_new, 0.0)         # packed-seq output: 0 at padding
        r_sc[t * B:(t + 1) * B, 0:H] = out[:, 0:H]
        r_sc[r * B:(r + 1) * B, H:2 * H] = out[:, H:2 * H]

        # freeze state through padding (packed-sequence semantics)
        h_cat = jnp.where(mask, h_new, h_cat)
        c_cat = jnp.where(mask, c_new, c_cat)

    # (3) Output MLP: relu([rnn_f | rnn_b] @ W1 + b1) @ W2 + b2  (dropout p=0)
    hid = jnp.maximum(
        jnp.dot(r_sc[...], w1_ref[...], preferred_element_type=jnp.float32)
        + b1_ref[...], 0.0)
    o_ref[...] = (jnp.dot(hid, w2_ref[...], preferred_element_type=jnp.float32)
                  + b2_ref[...])


def fused_forward_pallas(x_flat, lens, folded, *, T, B_pad, H):
    assert H & (H - 1) == 0, "kernel lane-mask trick assumes H is a power of two"
    n_pad = folded["w2"].shape[1]
    kernel = functools.partial(fused_model_kernel, T=T, B=B_pad, H=H)
    return pl.pallas_call(
        kernel,
        out_shape=jax.ShapeDtypeStruct((T * B_pad, n_pad), jnp.float32),
        scratch_shapes=[
            pltpu.VMEM((T * B_pad, 8 * H), jnp.float32),   # x-gates, both dirs
            pltpu.VMEM((T * B_pad, 2 * H), jnp.float32),   # LSTM outputs [f|b]
        ],
    )(x_flat, lens, folded["w_comb"], folded["b_comb"], folded["wh_blk"],
      folded["w1"], folded["b1"], folded["w2"], folded["b2"])


# ---------------------------------------------------------------------------
# One-time weight preparation (hoisted out of the per-call forward)
# ---------------------------------------------------------------------------

def prepare_params(p):
    """Fold/reorder weights once; returns arrays consumed by the kernel."""
    H = p["wh_f"].shape[0]
    d_fc = p["w_out1"].shape[1]
    n_targets = p["w_out2"].shape[1]
    n_pad = ((n_targets + 127) // 128) * 128       # lane-dense output store

    def reorder(w):   # PyTorch gate order (i,f,g,o) -> (i,f,o,g) on last dim
        return jnp.concatenate(
            [w[..., :2 * H], w[..., 3 * H:4 * H], w[..., 2 * H:3 * H]], axis=-1)

    def interleave(wf, wb):   # (.,4H)+(.,4H) -> (.,8H): i_f,i_b,f_f,f_b,o_f,o_b,g_f,g_b
        return jnp.concatenate(
            [jnp.concatenate([wf[..., k * H:(k + 1) * H],
                              wb[..., k * H:(k + 1) * H]], axis=-1)
             for k in range(4)], axis=-1)

    # fold the input Linear into the LSTM input projections, interleave dirs
    w_comb = interleave(reorder(p["w_inp"] @ p["wx_f"]),
                        reorder(p["w_inp"] @ p["wx_b"]))          # (d_in, 8H)
    b_comb = interleave(reorder(p["b_f"]), reorder(p["b_b"]))      # (1, 8H)

    # block-diagonal recurrent weights in the interleaved gate layout
    zh = jnp.zeros((H, 4 * H), jnp.float32)
    wh_blk = jnp.concatenate([interleave(reorder(p["wh_f"]), zh),
                              interleave(zh, reorder(p["wh_b"]))], axis=0)  # (2H, 8H)

    w1 = p["w_out1"]                                               # (2H, d_fc)
    b1 = p["b_out1"].reshape(1, d_fc)
    w2 = jnp.zeros((d_fc, n_pad), jnp.float32).at[:, :n_targets].set(p["w_out2"])
    b2 = jnp.zeros((1, n_pad), jnp.float32).at[:, :n_targets].set(
        p["b_out2"].reshape(1, n_targets))

    return {"w_comb": w_comb, "b_comb": b_comb, "wh_blk": wh_blk,
            "w1": w1, "b1": b1, "w2": w2, "b2": b2}


# ---------------------------------------------------------------------------
# Jitted forward (only data prep + one fused kernel call)
# ---------------------------------------------------------------------------

@functools.partial(jax.jit, static_argnames=("n_targets",))
def model_forward(x, x_len, folded, *, n_targets):
    B, T, d_in = x.shape
    H = folded["wh_blk"].shape[0] // 2
    n_pad = folded["w2"].shape[1]
    B_pad = ((B + 7) // 8) * 8                     # sublane-align the batch

    # pad batch, flatten time-major (row = t*B_pad + b)
    x_p = jnp.zeros((B_pad, T, d_in), x.dtype).at[:B].set(x)
    x_flat = jnp.transpose(x_p, (1, 0, 2)).reshape(T * B_pad, d_in)
    lens_p = jnp.zeros((B_pad, 1), jnp.float32).at[:B, 0].set(
        x_len.astype(jnp.float32))

    y_flat = fused_forward_pallas(x_flat, lens_p, folded, T=T, B_pad=B_pad, H=H)
    y = jnp.transpose(y_flat.reshape(T, B_pad, n_pad), (1, 0, 2))
    return y[:B, :, :n_targets]


# ---------------------------------------------------------------------------
# Pure-JAX reference (for correctness checking)
# ---------------------------------------------------------------------------

def reverse_valid(x_btd, lens):
    """Reverse each sequence over its valid prefix only (pack_padded semantics)."""
    T = x_btd.shape[1]
    t_idx = jnp.arange(T)[None, :]
    lens_b = lens[:, None]
    rev_idx = jnp.where(t_idx < lens_b, lens_b - 1 - t_idx, t_idx)
    return jnp.take_along_axis(x_btd, rev_idx[..., None], axis=1)


def ref_lstm_dir(x_tm, lens, wx, wh, b):
    T, B, _ = x_tm.shape
    H = wh.shape[0]

    def step(carry, inp):
        h, c = carry
        x_t, t = inp
        gates = x_t @ wx + h @ wh + b
        i_g = jax.nn.sigmoid(gates[:, :H])
        f_g = jax.nn.sigmoid(gates[:, H:2 * H])
        g_g = jnp.tanh(gates[:, 2 * H:3 * H])
        o_g = jax.nn.sigmoid(gates[:, 3 * H:])
        c_new = f_g * c + i_g * g_g
        h_new = o_g * jnp.tanh(c_new)
        valid = (lens > t)[:, None]
        h = jnp.where(valid, h_new, h)
        c = jnp.where(valid, c_new, c)
        return (h, c), jnp.where(valid, h_new, 0.0)

    init = (jnp.zeros((B, H), jnp.float32), jnp.zeros((B, H), jnp.float32))
    _, outs = lax.scan(step, init, (x_tm, jnp.arange(T)))
    return outs


def ref_forward(x, x_len, p):
    B, T, _ = x.shape
    h = (x.reshape(B * T, -1) @ p["w_inp"]).reshape(B, T, -1)
    lens = x_len.astype(jnp.int32)
    out_f = jnp.transpose(
        ref_lstm_dir(jnp.transpose(h, (1, 0, 2)), lens,
                     p["wx_f"], p["wh_f"], p["b_f"][0]), (1, 0, 2))
    h_rev = reverse_valid(h, x_len)
    out_b = reverse_valid(jnp.transpose(
        ref_lstm_dir(jnp.transpose(h_rev, (1, 0, 2)), lens,
                     p["wx_b"], p["wh_b"], p["b_b"][0]), (1, 0, 2)), x_len)
    rnn_out = jnp.concatenate([out_f, out_b], axis=-1)
    hid = jnp.maximum(rnn_out.reshape(B * T, -1) @ p["w_out1"] + p["b_out1"], 0.0)
    y = hid @ p["w_out2"] + p["b_out2"]
    return y.reshape(B, T, -1)


# ---------------------------------------------------------------------------
# Main
# ---------------------------------------------------------------------------

if __name__ == "__main__":
    d_in, d_rnn, d_fc_out, n_targets = 16, 32, 32, 4
    B, T = 2, 8
    H = d_rnn

    key = jax.random.PRNGKey(0)
    keys = jax.random.split(key, 16)

    def init(k, shape, scale=0.1):
        return (scale * jax.random.normal(k, shape)).astype(jnp.float32)

    params = {
        # inp: Linear(d_in, d_rnn, bias=False); stored pre-transposed (d_in, d_rnn)
        "w_inp": init(keys[0], (d_in, d_rnn)),
        # forward LSTM direction (PyTorch gate order i, f, g, o)
        "wx_f": init(keys[1], (d_rnn, 4 * H)),
        "wh_f": init(keys[2], (H, 4 * H)),
        "b_f": init(keys[3], (1, 4 * H)),     # b_ih + b_hh combined
        # backward LSTM direction
        "wx_b": init(keys[4], (d_rnn, 4 * H)),
        "wh_b": init(keys[5], (H, 4 * H)),
        "b_b": init(keys[6], (1, 4 * H)),
        # OutLayer
        "w_out1": init(keys[7], (2 * H, d_fc_out)),
        "b_out1": init(keys[8], (d_fc_out,)),
        "w_out2": init(keys[9], (d_fc_out, n_targets)),
        "b_out2": jnp.zeros((n_targets,), jnp.float32),  # nn.init.constant_(bias, 0.0)
    }

    x = jax.random.normal(keys[10], (B, T, d_in), dtype=jnp.float32)
    x_len = jnp.array([T, 5], dtype=jnp.int32)

    # one-time weight folding (done when weights change, not per call)
    folded = jax.tree_util.tree_map(jax.block_until_ready, prepare_params(params))

    y = model_forward(x, x_len, folded, n_targets=n_targets)
    y = jax.block_until_ready(y)

    y_ref = ref_forward(x, x_len, params)
    assert y.shape == (B, T, n_targets)
    assert jnp.allclose(y, y_ref, rtol=1e-4, atol=1e-4), (
        f"max err {jnp.max(jnp.abs(y - y_ref))}")

    print("KERNEL_OK")
</pallas_src>

<mosaic_0001>
module attributes {stable_mosaic.version = 11 : i64} {
  func.func @fused_model_kernel(%arg0: memref<64x16xf32, #tpu.memory_space<vmem>>, %arg1: memref<8x1xf32, #tpu.memory_space<vmem>>, %arg2: memref<16x256xf32, #tpu.memory_space<vmem>>, %arg3: memref<1x256xf32, #tpu.memory_space<vmem>>, %arg4: memref<64x256xf32, #tpu.memory_space<vmem>>, %arg5: memref<64x32xf32, #tpu.memory_space<vmem>>, %arg6: memref<1x32xf32, #tpu.memory_space<vmem>>, %arg7: memref<32x128xf32, #tpu.memory_space<vmem>>, %arg8: memref<1x128xf32, #tpu.memory_space<vmem>>, %arg9: memref<64x128xf32, #tpu.memory_space<vmem>>, %arg10: memref<64x256xf32, #tpu.memory_space<vmem>>, %arg11: memref<64x64xf32, #tpu.memory_space<vmem>>) attributes {dimension_semantics = [], scalar_prefetch = 0 : i64, scratch_operands = 2 : i64, tpu.core_type = #tpu.core_type<tc>} {
    %c0 = arith.constant 0 : index
    %c0_0 = arith.constant 0 : index
    %0 = vector.load %arg0[%c0, %c0_0] : memref<64x16xf32, #tpu.memory_space<vmem>>, vector<64x16xf32>
    %c0_1 = arith.constant 0 : index
    %c0_2 = arith.constant 0 : index
    %1 = vector.load %arg2[%c0_1, %c0_2] : memref<16x256xf32, #tpu.memory_space<vmem>>, vector<16x256xf32>
    %cst = arith.constant dense<0.000000e+00> : vector<64x256xf32>
    %2 = tpu.matmul %0, %1, %cst {dimension_numbers = #tpu.dot_dimension_numbers<[1], [0], [0], [1], [0, 0, 1, 1], [], []>} : vector<64x16xf32>, vector<16x256xf32>, vector<64x256xf32> -> vector<64x256xf32>
    %c0_3 = arith.constant 0 : index
    %c0_4 = arith.constant 0 : index
    %3 = vector.load %arg3[%c0_3, %c0_4] : memref<1x256xf32, #tpu.memory_space<vmem>>, vector<1x256xf32>
    %4 = vector.broadcast %3 : vector<1x256xf32> to vector<64x256xf32>
    %5 = arith.addf %2, %4 : vector<64x256xf32>
    %c0_5 = arith.constant 0 : index
    %c0_6 = arith.constant 0 : index
    %6 = vector.load %arg10[%c0_5, %c0_6] : memref<64x256xf32, #tpu.memory_space<vmem>>, vector<64x256xf32>
    tpu.vector_store %arg10[%c0_5, %c0_6], %5 {strides = array<i32>} : memref<64x256xf32, #tpu.memory_space<vmem>>, vector<64x256xf32>,
    %7 = tpu.iota {dimensions = array<i32: 1>} : vector<8x256xi32>
    %c32_i32 = arith.constant 32 : i32
    %8 = vector.broadcast %c32_i32 : i32 to vector<8x256xi32>
    %9 = arith.andi %7, %8 : vector<8x256xi32>
    %c0_i32 = arith.constant 0 : i32
    %10 = vector.broadcast %c0_i32 : i32 to vector<8x256xi32>
    %11 = arith.cmpi eq, %9, %10 : vector<8x256xi32>
    %12 = tpu.iota {dimensions = array<i32: 1>} : vector<8x64xi32>
    %c32_i32_7 = arith.constant 32 : i32
    %13 = vector.broadcast %c32_i32_7 : i32 to vector<8x64xi32>
    %14 = arith.cmpi slt, %12, %13 : vector<8x64xi32>
    %c0_8 = arith.constant 0 : index
    %c0_9 = arith.constant 0 : index
    %15 = vector.load %arg1[%c0_8, %c0_9] : memref<8x1xf32, #tpu.memory_space<vmem>>, vector<8x1xf32>
    %cst_10 = arith.constant 0.000000e+00 : f32
    %16 = vector.broadcast %cst_10 : f32 to vector<8x64xf32>
    %cst_11 = arith.constant 0.000000e+00 : f32
    %17 = vector.broadcast %cst_11 : f32 to vector<8x64xf32>
    %c0_12 = arith.constant 0 : index
    %c0_13 = arith.constant 0 : index
    %18 = vector.load %arg10[%c0_12, %c0_13] : memref<64x256xf32, #tpu.memory_space<vmem>>, vector<8x256xf32>
    %c56 = arith.constant 56 : index
    %c0_14 = arith.constant 0 : index
    %19 = vector.load %arg10[%c56, %c0_14] : memref<64x256xf32, #tpu.memory_space<vmem>>, vector<8x256xf32>
    %20 = arith.select %11, %18, %19 : vector<8x256xi1>, vector<8x256xf32>
    %c0_15 = arith.constant 0 : index
    %c0_16 = arith.constant 0 : index
    %21 = vector.load %arg4[%c0_15, %c0_16] : memref<64x256xf32, #tpu.memory_space<vmem>>, vector<64x256xf32>
    %cst_17 = arith.constant dense<0.000000e+00> : vector<8x256xf32>
    %22 = tpu.matmul %16, %21, %cst_17 {dimension_numbers = #tpu.dot_dimension_numbers<[1], [0], [0], [1], [0, 0, 1, 1], [], []>} : vector<8x64xf32>, vector<64x256xf32>, vector<8x256xf32> -> vector<8x256xf32>
    %23 = arith.addf %20, %22 : vector<8x256xf32>
    %24 = vector.extract_strided_slice %23 {offsets = [0, 0], sizes = [8, 192], strides = [1, 1]} : vector<8x256xf32> to vector<8x192xf32>
    %25 = arith.negf %24 : vector<8x192xf32>
    %26 = math.exp %25 : vector<8x192xf32>
    %cst_18 = arith.constant 1.000000e+00 : f32
    %27 = vector.broadcast %cst_18 : f32 to vector<8x192xf32>
    %28 = arith.addf %27, %26 : vector<8x192xf32>
    %29 = arith.divf %27, %28 : vector<8x192xf32>
    %30 = vector.extract_strided_slice %23 {offsets = [0, 192], sizes = [8, 64], strides = [1, 1]} : vector<8x256xf32> to vector<8x64xf32>
    %31 = math.tanh %30 : vector<8x64xf32>
    %32 = vector.extract_strided_slice %29 {offsets = [0, 0], sizes = [8, 64], strides = [1, 1]} : vector<8x192xf32> to vector<8x64xf32>
    %33 = vector.extract_strided_slice %29 {offsets = [0, 64], sizes = [8, 64], strides = [1, 1]} : vector<8x192xf32> to vector<8x64xf32>
    %34 = vector.extract_strided_slice %29 {offsets = [0, 128], sizes = [8, 64], strides = [1, 1]} : vector<8x192xf32> to vector<8x64xf32>
    %35 = arith.mulf %33, %17 : vector<8x64xf32>
    %36 = arith.mulf %32, %31 : vector<8x64xf32>
    %37 = arith.addf %35, %36 : vector<8x64xf32>
    %38 = math.tanh %37 : vector<8x64xf32>
    %39 = arith.mulf %34, %38 : vector<8x64xf32>
    %cst_19 = arith.constant 0.000000e+00 : f32
    %cst_20 = arith.constant 7.000000e+00 : f32
    %40 = vector.broadcast %cst_19 : f32 to vector<8x64xf32>
    %41 = vector.broadcast %cst_20 : f32 to vector<8x64xf32>
    %42 = arith.select %14, %40, %41 : vector<8x64xi1>, vector<8x64xf32>
    %43 = vector.broadcast %15 : vector<8x1xf32> to vector<8x64xf32>
    %44 = arith.cmpf ogt, %43, %42 : vector<8x64xf32>
    %cst_21 = arith.constant 0.000000e+00 : f32
    %45 = vector.broadcast %cst_21 : f32 to vector<8x64xf32>
    %46 = arith.select %44, %39, %45 : vector<8x64xi1>, vector<8x64xf32>
    %47 = vector.extract_strided_slice %46 {offsets = [0, 0], sizes = [8, 32], strides = [1, 1]} : vector<8x64xf32> to vector<8x32xf32>
    %c0_22 = arith.constant 0 : index
    %c0_23 = arith.constant 0 : index
    %48 = vector.load %arg11[%c0_22, %c0_23] : memref<64x64xf32, #tpu.memory_space<vmem>>, vector<8x32xf32>
    tpu.vector_store %arg11[%c0_22, %c0_23], %47 {strides = array<i32>} : memref<64x64xf32, #tpu.memory_space<vmem>>, vector<8x32xf32>,
    %49 = vector.extract_strided_slice %46 {offsets = [0, 32], sizes = [8, 32], strides = [1, 1]} : vector<8x64xf32> to vector<8x32xf32>
    %c56_24 = arith.constant 56 : index
    %c32 = arith.constant 32 : index
    %50 = vector.load %arg11[%c56_24, %c32] : memref<64x64xf32, #tpu.memory_space<vmem>>, vector<8x32xf32>
    tpu.vector_store %arg11[%c56_24, %c32], %49 {strides = array<i32>} : memref<64x64xf32, #tpu.memory_space<vmem>>, vector<8x32xf32>,
    %51 = arith.select %44, %39, %16 : vector<8x64xi1>, vector<8x64xf32>
    %52 = arith.select %44, %37, %17 : vector<8x64xi1>, vector<8x64xf32>
    %c8 = arith.constant 8 : index
    %c0_25 = arith.constant 0 : index
    %53 = vector.load %arg10[%c8, %c0_25] : memref<64x256xf32, #tpu.memory_space<vmem>>, vector<8x256xf32>
    %c48 = arith.constant 48 : index
    %c0_26 = arith.constant 0 : index
    %54 = vector.load %arg10[%c48, %c0_26] : memref<64x256xf32, #tpu.memory_space<vmem>>, vector<8x256xf32>
    %55 = arith.select %11, %53, %54 : vector<8x256xi1>, vector<8x256xf32>
    %c0_27 = arith.constant 0 : index
    %c0_28 = arith.constant 0 : index
    %56 = vector.load %arg4[%c0_27, %c0_28] : memref<64x256xf32, #tpu.memory_space<vmem>>, vector<64x256xf32>
    %cst_29 = arith.constant dense<0.000000e+00> : vector<8x256xf32>
    %57 = tpu.matmul %51, %56, %cst_29 {dimension_numbers = #tpu.dot_dimension_numbers<[1], [0], [0], [1], [0, 0, 1, 1], [], []>} : vector<8x64xf32>, vector<64x256xf32>, vector<8x256xf32> -> vector<8x256xf32>
    %58 = arith.addf %55, %57 : vector<8x256xf32>
    %59 = vector.extract_strided_slice %58 {offsets = [0, 0], sizes = [8, 192], strides = [1, 1]} : vector<8x256xf32> to vector<8x192xf32>
    %60 = arith.negf %59 : vector<8x192xf32>
    %61 = math.exp %60 : vector<8x192xf32>
    %cst_30 = arith.constant 1.000000e+00 : f32
    %62 = vector.broadcast %cst_30 : f32 to vector<8x192xf32>
    %63 = arith.addf %62, %61 : vector<8x192xf32>
    %64 = arith.divf %62, %63 : vector<8x192xf32>
    %65 = vector.extract_strided_slice %58 {offsets = [0, 192], sizes = [8, 64], strides = [1, 1]} : vector<8x256xf32> to vector<8x64xf32>
    %66 = math.tanh %65 : vector<8x64xf32>
    %67 = vector.extract_strided_slice %64 {offsets = [0, 0], sizes = [8, 64], strides = [1, 1]} : vector<8x192xf32> to vector<8x64xf32>
    %68 = vector.extract_strided_slice %64 {offsets = [0, 64], sizes = [8, 64], strides = [1, 1]} : vector<8x192xf32> to vector<8x64xf32>
    %69 = vector.extract_strided_slice %64 {offsets = [0, 128], sizes = [8, 64], strides = [1, 1]} : vector<8x192xf32> to vector<8x64xf32>
    %70 = arith.mulf %68, %52 : vector<8x64xf32>
    %71 = arith.mulf %67, %66 : vector<8x64xf32>
    %72 = arith.addf %70, %71 : vector<8x64xf32>
    %73 = math.tanh %72 : vector<8x64xf32>
    %74 = arith.mulf %69, %73 : vector<8x64xf32>
    %cst_31 = arith.constant 1.000000e+00 : f32
    %cst_32 = arith.constant 6.000000e+00 : f32
    %75 = vector.broadcast %cst_31 : f32 to vector<8x64xf32>
    %76 = vector.broadcast %cst_32 : f32 to vector<8x64xf32>
    %77 = arith.select %14, %75, %76 : vector<8x64xi1>, vector<8x64xf32>
    %78 = vector.broadcast %15 : vector<8x1xf32> to vector<8x64xf32>
    %79 = arith.cmpf ogt, %78, %77 : vector<8x64xf32>
    %cst_33 = arith.constant 0.000000e+00 : f32
    %80 = vector.broadcast %cst_33 : f32 to vector<8x64xf32>
    %81 = arith.select %79, %74, %80 : vector<8x64xi1>, vector<8x64xf32>
    %82 = vector.extract_strided_slice %81 {offsets = [0, 0], sizes = [8, 32], strides = [1, 1]} : vector<8x64xf32> to vector<8x32xf32>
    %c8_34 = arith.constant 8 : index
    %c0_35 = arith.constant 0 : index
    %83 = vector.load %arg11[%c8_34, %c0_35] : memref<64x64xf32, #tpu.memory_space<vmem>>, vector<8x32xf32>
    tpu.vector_store %arg11[%c8_34, %c0_35], %82 {strides = array<i32>} : memref<64x64xf32, #tpu.memory_space<vmem>>, vector<8x32xf32>,
    %84 = vector.extract_strided_slice %81 {offsets = [0, 32], sizes = [8, 32], strides = [1, 1]} : vector<8x64xf32> to vector<8x32xf32>
    %c48_36 = arith.constant 48 : index
    %c32_37 = arith.constant 32 : index
    %85 = vector.load %arg11[%c48_36, %c32_37] : memref<64x64xf32, #tpu.memory_space<vmem>>, vector<8x32xf32>
    tpu.vector_store %arg11[%c48_36, %c32_37], %84 {strides = array<i32>} : memref<64x64xf32, #tpu.memory_space<vmem>>, vector<8x32xf32>,
    %86 = arith.select %79, %74, %51 : vector<8x64xi1>, vector<8x64xf32>
    %87 = arith.select %79, %72, %52 : vector<8x64xi1>, vector<8x64xf32>
    %c16 = arith.constant 16 : index
    %c0_38 = arith.constant 0 : index
    %88 = vector.load %arg10[%c16, %c0_38] : memref<64x256xf32, #tpu.memory_space<vmem>>, vector<8x256xf32>
    %c40 = arith.constant 40 : index
    %c0_39 = arith.constant 0 : index
    %89 = vector.load %arg10[%c40, %c0_39] : memref<64x256xf32, #tpu.memory_space<vmem>>, vector<8x256xf32>
    %90 = arith.select %11, %88, %89 : vector<8x256xi1>, vector<8x256xf32>
    %c0_40 = arith.constant 0 : index
    %c0_41 = arith.constant 0 : index
    %91 = vector.load %arg4[%c0_40, %c0_41] : memref<64x256xf32, #tpu.memory_space<vmem>>, vector<64x256xf32>
    %cst_42 = arith.constant dense<0.000000e+00> : vector<8x256xf32>
    %92 = tpu.matmul %86, %91, %cst_42 {dimension_numbers = #tpu.dot_dimension_numbers<[1], [0], [0], [1], [0, 0, 1, 1], [], []>} : vector<8x64xf32>, vector<64x256xf32>, vector<8x256xf32> -> vector<8x256xf32>
    %93 = arith.addf %90, %92 : vector<8x256xf32>
    %94 = vector.extract_strided_slice %93 {offsets = [0, 0], sizes = [8, 192], strides = [1, 1]} : vector<8x256xf32> to vector<8x192xf32>
    %95 = arith.negf %94 : vector<8x192xf32>
    %96 = math.exp %95 : vector<8x192xf32>
    %cst_43 = arith.constant 1.000000e+00 : f32
    %97 = vector.broadcast %cst_43 : f32 to vector<8x192xf32>
    %98 = arith.addf %97, %96 : vector<8x192xf32>
    %99 = arith.divf %97, %98 : vector<8x192xf32>
    %100 = vector.extract_strided_slice %93 {offsets = [0, 192], sizes = [8, 64], strides = [1, 1]} : vector<8x256xf32> to vector<8x64xf32>
    %101 = math.tanh %100 : vector<8x64xf32>
    %102 = vector.extract_strided_slice %99 {offsets = [0, 0], sizes = [8, 64], strides = [1, 1]} : vector<8x192xf32> to vector<8x64xf32>
    %103 = vector.extract_strided_slice %99 {offsets = [0, 64], sizes = [8, 64], strides = [1, 1]} : vector<8x192xf32> to vector<8x64xf32>
    %104 = vector.extract_strided_slice %99 {offsets = [0, 128], sizes = [8, 64], strides = [1, 1]} : vector<8x192xf32> to vector<8x64xf32>
    %105 = arith.mulf %103, %87 : vector<8x64xf32>
    %106 = arith.mulf %102, %101 : vector<8x64xf32>
    %107 = arith.addf %105, %106 : vector<8x64xf32>
    %108 = math.tanh %107 : vector<8x64xf32>
    %109 = arith.mulf %104, %108 : vector<8x64xf32>
    %cst_44 = arith.constant 2.000000e+00 : f32
    %cst_45 = arith.constant 5.000000e+00 : f32
    %110 = vector.broadcast %cst_44 : f32 to vector<8x64xf32>
    %111 = vector.broadcast %cst_45 : f32 to vector<8x64xf32>
    %112 = arith.select %14, %110, %111 : vector<8x64xi1>, vector<8x64xf32>
    %113 = vector.broadcast %15 : vector<8x1xf32> to vector<8x64xf32>
    %114 = arith.cmpf ogt, %113, %112 : vector<8x64xf32>
    %cst_46 = arith.constant 0.000000e+00 : f32
    %115 = vector.broadcast %cst_46 : f32 to vector<8x64xf32>
    %116 = arith.select %114, %109, %115 : vector<8x64xi1>, vector<8x64xf32>
    %117 = vector.extract_strided_slice %116 {offsets = [0, 0], sizes = [8, 32], strides = [1, 1]} : vector<8x64xf32> to vector<8x32xf32>
    %c16_47 = arith.constant 16 : index
    %c0_48 = arith.constant 0 : index
    %118 = vector.load %arg11[%c16_47, %c0_48] : memref<64x64xf32, #tpu.memory_space<vmem>>, vector<8x32xf32>
    tpu.vector_store %arg11[%c16_47, %c0_48], %117 {strides = array<i32>} : memref<64x64xf32, #tpu.memory_space<vmem>>, vector<8x32xf32>,
    %119 = vector.extract_strided_slice %116 {offsets = [0, 32], sizes = [8, 32], strides = [1, 1]} : vector<8x64xf32> to vector<8x32xf32>
    %c40_49 = arith.constant 40 : index
    %c32_50 = arith.constant 32 : index
    %120 = vector.load %arg11[%c40_49, %c32_50] : memref<64x64xf32, #tpu.memory_space<vmem>>, vector<8x32xf32>
    tpu.vector_store %arg11[%c40_49, %c32_50], %119 {strides = array<i32>} : memref<64x64xf32, #tpu.memory_space<vmem>>, vector<8x32xf32>,
    %121 = arith.select %114, %109, %86 : vector<8x64xi1>, vector<8x64xf32>
    %122 = arith.select %114, %107, %87 : vector<8x64xi1>, vector<8x64xf32>
    %c24 = arith.constant 24 : index
    %c0_51 = arith.constant 0 : index
    %123 = vector.load %arg10[%c24, %c0_51] : memref<64x256xf32, #tpu.memory_space<vmem>>, vector<8x256xf32>
    %c32_52 = arith.constant 32 : index
    %c0_53 = arith.constant 0 : index
    %124 = vector.load %arg10[%c32_52, %c0_53] : memref<64x256xf32, #tpu.memory_space<vmem>>, vector<8x256xf32>
    %125 = arith.select %11, %123, %124 : vector<8x256xi1>, vector<8x256xf32>
    %c0_54 = arith.constant 0 : index
    %c0_55 = arith.constant 0 : index
    %126 = vector.load %arg4[%c0_54, %c0_55] : memref<64x256xf32, #tpu.memory_space<vmem>>, vector<64x256xf32>
    %cst_56 = arith.constant dense<0.000000e+00> : vector<8x256xf32>
    %127 = tpu.matmul %121, %126, %cst_56 {dimension_numbers = #tpu.dot_dimension_numbers<[1], [0], [0], [1], [0, 0, 1, 1], [], []>} : vector<8x64xf32>, vector<64x256xf32>, vector<8x256xf32> -> vector<8x256xf32>
    %128 = arith.addf %125, %127 : vector<8x256xf32>
    %129 = vector.extract_strided_slice %128 {offsets = [0, 0], sizes = [8, 192], strides = [1, 1]} : vector<8x256xf32> to vector<8x192xf32>
    %130 = arith.negf %129 : vector<8x192xf32>
    %131 = math.exp %130 : vector<8x192xf32>
    %cst_57 = arith.constant 1.000000e+00 : f32
    %132 = vector.broadcast %cst_57 : f32 to vector<8x192xf32>
    %133 = arith.addf %132, %131 : vector<8x192xf32>
    %134 = arith.divf %132, %133 : vector<8x192xf32>
    %135 = vector.extract_strided_slice %128 {offsets = [0, 192], sizes = [8, 64], strides = [1, 1]} : vector<8x256xf32> to vector<8x64xf32>
    %136 = math.tanh %135 : vector<8x64xf32>
    %137 = vector.extract_strided_slice %134 {offsets = [0, 0], sizes = [8, 64], strides = [1, 1]} : vector<8x192xf32> to vector<8x64xf32>
    %138 = vector.extract_strided_slice %134 {offsets = [0, 64], sizes = [8, 64], strides = [1, 1]} : vector<8x192xf32> to vector<8x64xf32>
    %139 = vector.extract_strided_slice %134 {offsets = [0, 128], sizes = [8, 64], strides = [1, 1]} : vector<8x192xf32> to vector<8x64xf32>
    %140 = arith.mulf %138, %122 : vector<8x64xf32>
    %141 = arith.mulf %137, %136 : vector<8x64xf32>
    %142 = arith.addf %140, %141 : vector<8x64xf32>
    %143 = math.tanh %142 : vector<8x64xf32>
    %144 = arith.mulf %139, %143 : vector<8x64xf32>
    %cst_58 = arith.constant 3.000000e+00 : f32
    %cst_59 = arith.constant 4.000000e+00 : f32
    %145 = vector.broadcast %cst_58 : f32 to vector<8x64xf32>
    %146 = vector.broadcast %cst_59 : f32 to vector<8x64xf32>
    %147 = arith.select %14, %145, %146 : vector<8x64xi1>, vector<8x64xf32>
    %148 = vector.broadcast %15 : vector<8x1xf32> to vector<8x64xf32>
    %149 = arith.cmpf ogt, %148, %147 : vector<8x64xf32>
    %cst_60 = arith.constant 0.000000e+00 : f32
    %150 = vector.broadcast %cst_60 : f32 to vector<8x64xf32>
    %151 = arith.select %149, %144, %150 : vector<8x64xi1>, vector<8x64xf32>
    %152 = vector.extract_strided_slice %151 {offsets = [0, 0], sizes = [8, 32], strides = [1, 1]} : vector<8x64xf32> to vector<8x32xf32>
    %c24_61 = arith.constant 24 : index
    %c0_62 = arith.constant 0 : index
    %153 = vector.load %arg11[%c24_61, %c0_62] : memref<64x64xf32, #tpu.memory_space<vmem>>, vector<8x32xf32>
    tpu.vector_store %arg11[%c24_61, %c0_62], %152 {strides = array<i32>} : memref<64x64xf32, #tpu.memory_space<vmem>>, vector<8x32xf32>,
    %154 = vector.extract_strided_slice %151 {offsets = [0, 32], sizes = [8, 32], strides = [1, 1]} : vector<8x64xf32> to vector<8x32xf32>
    %c32_63 = arith.constant 32 : index
    %c32_64 = arith.constant 32 : index
    %155 = vector.load %arg11[%c32_63, %c32_64] : memref<64x64xf32, #tpu.memory_space<vmem>>, vector<8x32xf32>
    tpu.vector_store %arg11[%c32_63, %c32_64], %154 {strides = array<i32>} : memref<64x64xf32, #tpu.memory_space<vmem>>, vector<8x32xf32>,
    %156 = arith.select %149, %144, %121 : vector<8x64xi1>, vector<8x64xf32>
    %157 = arith.select %149, %142, %122 : vector<8x64xi1>, vector<8x64xf32>
    %c32_65 = arith.constant 32 : index
    %c0_66 = arith.constant 0 : index
    %158 = vector.load %arg10[%c32_65, %c0_66] : memref<64x256xf32, #tpu.memory_space<vmem>>, vector<8x256xf32>
    %c24_67 = arith.constant 24 : index
    %c0_68 = arith.constant 0 : index
    %159 = vector.load %arg10[%c24_67, %c0_68] : memref<64x256xf32, #tpu.memory_space<vmem>>, vector<8x256xf32>
    %160 = arith.select %11, %158, %159 : vector<8x256xi1>, vector<8x256xf32>
    %c0_69 = arith.constant 0 : index
    %c0_70 = arith.constant 0 : index
    %161 = vector.load %arg4[%c0_69, %c0_70] : memref<64x256xf32, #tpu.memory_space<vmem>>, vector<64x256xf32>
    %cst_71 = arith.constant dense<0.000000e+00> : vector<8x256xf32>
    %162 = tpu.matmul %156, %161, %cst_71 {dimension_numbers = #tpu.dot_dimension_numbers<[1], [0], [0], [1], [0, 0, 1, 1], [], []>} : vector<8x64xf32>, vector<64x256xf32>, vector<8x256xf32> -> vector<8x256xf32>
    %163 = arith.addf %160, %162 : vector<8x256xf32>
    %164 = vector.extract_strided_slice %163 {offsets = [0, 0], sizes = [8, 192], strides = [1, 1]} : vector<8x256xf32> to vector<8x192xf32>
    %165 = arith.negf %164 : vector<8x192xf32>
    %166 = math.exp %165 : vector<8x192xf32>
    %cst_72 = arith.constant 1.000000e+00 : f32
    %167 = vector.broadcast %cst_72 : f32 to vector<8x192xf32>
    %168 = arith.addf %167, %166 : vector<8x192xf32>
    %169 = arith.divf %167, %168 : vector<8x192xf32>
    %170 = vector.extract_strided_slice %163 {offsets = [0, 192], sizes = [8, 64], strides = [1, 1]} : vector<8x256xf32> to vector<8x64xf32>
    %171 = math.tanh %170 : vector<8x64xf32>
    %172 = vector.extract_strided_slice %169 {offsets = [0, 0], sizes = [8, 64], strides = [1, 1]} : vector<8x192xf32> to vector<8x64xf32>
    %173 = vector.extract_strided_slice %169 {offsets = [0, 64], sizes = [8, 64], strides = [1, 1]} : vector<8x192xf32> to vector<8x64xf32>
    %174 = vector.extract_strided_slice %169 {offsets = [0, 128], sizes = [8, 64], strides = [1, 1]} : vector<8x192xf32> to vector<8x64xf32>
    %175 = arith.mulf %173, %157 : vector<8x64xf32>
    %176 = arith.mulf %172, %171 : vector<8x64xf32>
    %177 = arith.addf %175, %176 : vector<8x64xf32>
    %178 = math.tanh %177 : vector<8x64xf32>
    %179 = arith.mulf %174, %178 : vector<8x64xf32>
    %cst_73 = arith.constant 4.000000e+00 : f32
    %cst_74 = arith.constant 3.000000e+00 : f32
    %180 = vector.broadcast %cst_73 : f32 to vector<8x64xf32>
    %181 = vector.broadcast %cst_74 : f32 to vector<8x64xf32>
    %182 = arith.select %14, %180, %181 : vector<8x64xi1>, vector<8x64xf32>
    %183 = vector.broadcast %15 : vector<8x1xf32> to vector<8x64xf32>
    %184 = arith.cmpf ogt, %183, %182 : vector<8x64xf32>
    %cst_75 = arith.constant 0.000000e+00 : f32
    %185 = vector.broadcast %cst_75 : f32 to vector<8x64xf32>
    %186 = arith.select %184, %179, %185 : vector<8x64xi1>, vector<8x64xf32>
    %187 = vector.extract_strided_slice %186 {offsets = [0, 0], sizes = [8, 32], strides = [1, 1]} : vector<8x64xf32> to vector<8x32xf32>
    %c32_76 = arith.constant 32 : index
    %c0_77 = arith.constant 0 : index
    %188 = vector.load %arg11[%c32_76, %c0_77] : memref<64x64xf32, #tpu.memory_space<vmem>>, vector<8x32xf32>
    tpu.vector_store %arg11[%c32_76, %c0_77], %187 {strides = array<i32>} : memref<64x64xf32, #tpu.memory_space<vmem>>, vector<8x32xf32>,
    %189 = vector.extract_strided_slice %186 {offsets = [0, 32], sizes = [8, 32], strides = [1, 1]} : vector<8x64xf32> to vector<8x32xf32>
    %c24_78 = arith.constant 24 : index
    %c32_79 = arith.constant 32 : index
    %190 = vector.load %arg11[%c24_78, %c32_79] : memref<64x64xf32, #tpu.memory_space<vmem>>, vector<8x32xf32>
    tpu.vector_store %arg11[%c24_78, %c32_79], %189 {strides = array<i32>} : memref<64x64xf32, #tpu.memory_space<vmem>>, vector<8x32xf32>,
    %191 = arith.select %184, %179, %156 : vector<8x64xi1>, vector<8x64xf32>
    %192 = arith.select %184, %177, %157 : vector<8x64xi1>, vector<8x64xf32>
    %c40_80 = arith.constant 40 : index
    %c0_81 = arith.constant 0 : index
    %193 = vector.load %arg10[%c40_80, %c0_81] : memref<64x256xf32, #tpu.memory_space<vmem>>, vector<8x256xf32>
    %c16_82 = arith.constant 16 : index
    %c0_83 = arith.constant 0 : index
    %194 = vector.load %arg10[%c16_82, %c0_83] : memref<64x256xf32, #tpu.memory_space<vmem>>, vector<8x256xf32>
    %195 = arith.select %11, %193, %194 : vector<8x256xi1>, vector<8x256xf32>
    %c0_84 = arith.constant 0 : index
    %c0_85 = arith.constant 0 : index
    %196 = vector.load %arg4[%c0_84, %c0_85] : memref<64x256xf32, #tpu.memory_space<vmem>>, vector<64x256xf32>
    %cst_86 = arith.constant dense<0.000000e+00> : vector<8x256xf32>
    %197 = tpu.matmul %191, %196, %cst_86 {dimension_numbers = #tpu.dot_dimension_numbers<[1], [0], [0], [1], [0, 0, 1, 1], [], []>} : vector<8x64xf32>, vector<64x256xf32>, vector<8x256xf32> -> vector<8x256xf32>
    %198 = arith.addf %195, %197 : vector<8x256xf32>
    %199 = vector.extract_strided_slice %198 {offsets = [0, 0], sizes = [8, 192], strides = [1, 1]} : vector<8x256xf32> to vector<8x192xf32>
    %200 = arith.negf %199 : vector<8x192xf32>
    %201 = math.exp %200 : vector<8x192xf32>
    %cst_87 = arith.constant 1.000000e+00 : f32
    %202 = vector.broadcast %cst_87 : f32 to vector<8x192xf32>
    %203 = arith.addf %202, %201 : vector<8x192xf32>
    %204 = arith.divf %202, %203 : vector<8x192xf32>
    %205 = vector.extract_strided_slice %198 {offsets = [0, 192], sizes = [8, 64], strides = [1, 1]} : vector<8x256xf32> to vector<8x64xf32>
    %206 = math.tanh %205 : vector<8x64xf32>
    %207 = vector.extract_strided_slice %204 {offsets = [0, 0], sizes = [8, 64], strides = [1, 1]} : vector<8x192xf32> to vector<8x64xf32>
    %208 = vector.extract_strided_slice %204 {offsets = [0, 64], sizes = [8, 64], strides = [1, 1]} : vector<8x192xf32> to vector<8x64xf32>
    %209 = vector.extract_strided_slice %204 {offsets = [0, 128], sizes = [8, 64], strides = [1, 1]} : vector<8x192xf32> to vector<8x64xf32>
    %210 = arith.mulf %208, %192 : vector<8x64xf32>
    %211 = arith.mulf %207, %206 : vector<8x64xf32>
    %212 = arith.addf %210, %211 : vector<8x64xf32>
    %213 = math.tanh %212 : vector<8x64xf32>
    %214 = arith.mulf %209, %213 : vector<8x64xf32>
    %cst_88 = arith.constant 5.000000e+00 : f32
    %cst_89 = arith.constant 2.000000e+00 : f32
    %215 = vector.broadcast %cst_88 : f32 to vector<8x64xf32>
    %216 = vector.broadcast %cst_89 : f32 to vector<8x64xf32>
    %217 = arith.select %14, %215, %216 : vector<8x64xi1>, vector<8x64xf32>
    %218 = vector.broadcast %15 : vector<8x1xf32> to vector<8x64xf32>
    %219 = arith.cmpf ogt, %218, %217 : vector<8x64xf32>
    %cst_90 = arith.constant 0.000000e+00 : f32
    %220 = vector.broadcast %cst_90 : f32 to vector<8x64xf32>
    %221 = arith.select %219, %214, %220 : vector<8x64xi1>, vector<8x64xf32>
    %222 = vector.extract_strided_slice %221 {offsets = [0, 0], sizes = [8, 32], strides = [1, 1]} : vector<8x64xf32> to vector<8x32xf32>
    %c40_91 = arith.constant 40 : index
    %c0_92 = arith.constant 0 : index
    %223 = vector.load %arg11[%c40_91, %c0_92] : memref<64x64xf32, #tpu.memory_space<vmem>>, vector<8x32xf32>
    tpu.vector_store %arg11[%c40_91, %c0_92], %222 {strides = array<i32>} : memref<64x64xf32, #tpu.memory_space<vmem>>, vector<8x32xf32>,
    %224 = vector.extract_strided_slice %221 {offsets = [0, 32], sizes = [8, 32], strides = [1, 1]} : vector<8x64xf32> to vector<8x32xf32>
    %c16_93 = arith.constant 16 : index
    %c32_94 = arith.constant 32 : index
    %225 = vector.load %arg11[%c16_93, %c32_94] : memref<64x64xf32, #tpu.memory_space<vmem>>, vector<8x32xf32>
    tpu.vector_store %arg11[%c16_93, %c32_94], %224 {strides = array<i32>} : memref<64x64xf32, #tpu.memory_space<vmem>>, vector<8x32xf32>,
    %226 = arith.select %219, %214, %191 : vector<8x64xi1>, vector<8x64xf32>
    %227 = arith.select %219, %212, %192 : vector<8x64xi1>, vector<8x64xf32>
    %c48_95 = arith.constant 48 : index
    %c0_96 = arith.constant 0 : index
    %228 = vector.load %arg10[%c48_95, %c0_96] : memref<64x256xf32, #tpu.memory_space<vmem>>, vector<8x256xf32>
    %c8_97 = arith.constant 8 : index
    %c0_98 = arith.constant 0 : index
    %229 = vector.load %arg10[%c8_97, %c0_98] : memref<64x256xf32, #tpu.memory_space<vmem>>, vector<8x256xf32>
    %230 = arith.select %11, %228, %229 : vector<8x256xi1>, vector<8x256xf32>
    %c0_99 = arith.constant 0 : index
    %c0_100 = arith.constant 0 : index
    %231 = vector.load %arg4[%c0_99, %c0_100] : memref<64x256xf32, #tpu.memory_space<vmem>>, vector<64x256xf32>
    %cst_101 = arith.constant dense<0.000000e+00> : vector<8x256xf32>
    %232 = tpu.matmul %226, %231, %cst_101 {dimension_numbers = #tpu.dot_dimension_numbers<[1], [0], [0], [1], [0, 0, 1, 1], [], []>} : vector<8x64xf32>, vector<64x256xf32>, vector<8x256xf32> -> vector<8x256xf32>
    %233 = arith.addf %230, %232 : vector<8x256xf32>
    %234 = vector.extract_strided_slice %233 {offsets = [0, 0], sizes = [8, 192], strides = [1, 1]} : vector<8x256xf32> to vector<8x192xf32>
    %235 = arith.negf %234 : vector<8x192xf32>
    %236 = math.exp %235 : vector<8x192xf32>
    %cst_102 = arith.constant 1.000000e+00 : f32
    %237 = vector.broadcast %cst_102 : f32 to vector<8x192xf32>
    %238 = arith.addf %237, %236 : vector<8x192xf32>
    %239 = arith.divf %237, %238 : vector<8x192xf32>
    %240 = vector.extract_strided_slice %233 {offsets = [0, 192], sizes = [8, 64], strides = [1, 1]} : vector<8x256xf32> to vector<8x64xf32>
    %241 = math.tanh %240 : vector<8x64xf32>
    %242 = vector.extract_strided_slice %239 {offsets = [0, 0], sizes = [8, 64], strides = [1, 1]} : vector<8x192xf32> to vector<8x64xf32>
    %243 = vector.extract_strided_slice %239 {offsets = [0, 64], sizes = [8, 64], strides = [1, 1]} : vector<8x192xf32> to vector<8x64xf32>
    %244 = vector.extract_strided_slice %239 {offsets = [0, 128], sizes = [8, 64], strides = [1, 1]} : vector<8x192xf32> to vector<8x64xf32>
    %245 = arith.mulf %243, %227 : vector<8x64xf32>
    %246 = arith.mulf %242, %241 : vector<8x64xf32>
    %247 = arith.addf %245, %246 : vector<8x64xf32>
    %248 = math.tanh %247 : vector<8x64xf32>
    %249 = arith.mulf %244, %248 : vector<8x64xf32>
    %cst_103 = arith.constant 6.000000e+00 : f32
    %cst_104 = arith.constant 1.000000e+00 : f32
    %250 = vector.broadcast %cst_103 : f32 to vector<8x64xf32>
    %251 = vector.broadcast %cst_104 : f32 to vector<8x64xf32>
    %252 = arith.select %14, %250, %251 : vector<8x64xi1>, vector<8x64xf32>
    %253 = vector.broadcast %15 : vector<8x1xf32> to vector<8x64xf32>
    %254 = arith.cmpf ogt, %253, %252 : vector<8x64xf32>
    %cst_105 = arith.constant 0.000000e+00 : f32
    %255 = vector.broadcast %cst_105 : f32 to vector<8x64xf32>
    %256 = arith.select %254, %249, %255 : vector<8x64xi1>, vector<8x64xf32>
    %257 = vector.extract_strided_slice %256 {offsets = [0, 0], sizes = [8, 32], strides = [1, 1]} : vector<8x64xf32> to vector<8x32xf32>
    %c48_106 = arith.constant 48 : index
    %c0_107 = arith.constant 0 : index
    %258 = vector.load %arg11[%c48_106, %c0_107] : memref<64x64xf32, #tpu.memory_space<vmem>>, vector<8x32xf32>
    tpu.vector_store %arg11[%c48_106, %c0_107], %257 {strides = array<i32>} : memref<64x64xf32, #tpu.memory_space<vmem>>, vector<8x32xf32>,
    %259 = vector.extract_strided_slice %256 {offsets = [0, 32], sizes = [8, 32], strides = [1, 1]} : vector<8x64xf32> to vector<8x32xf32>
    %c8_108 = arith.constant 8 : index
    %c32_109 = arith.constant 32 : index
    %260 = vector.load %arg11[%c8_108, %c32_109] : memref<64x64xf32, #tpu.memory_space<vmem>>, vector<8x32xf32>
    tpu.vector_store %arg11[%c8_108, %c32_109], %259 {strides = array<i32>} : memref<64x64xf32, #tpu.memory_space<vmem>>, vector<8x32xf32>,
    %261 = arith.select %254, %249, %226 : vector<8x64xi1>, vector<8x64xf32>
    %262 = arith.select %254, %247, %227 : vector<8x64xi1>, vector<8x64xf32>
    %c56_110 = arith.constant 56 : index
    %c0_111 = arith.constant 0 : index
    %263 = vector.load %arg10[%c56_110, %c0_111] : memref<64x256xf32, #tpu.memory_space<vmem>>, vector<8x256xf32>
    %c0_112 = arith.constant 0 : index
    %c0_113 = arith.constant 0 : index
    %264 = vector.load %arg10[%c0_112, %c0_113] : memref<64x256xf32, #tpu.memory_space<vmem>>, vector<8x256xf32>
    %265 = arith.select %11, %263, %264 : vector<8x256xi1>, vector<8x256xf32>
    %c0_114 = arith.constant 0 : index
    %c0_115 = arith.constant 0 : index
    %266 = vector.load %arg4[%c0_114, %c0_115] : memref<64x256xf32, #tpu.memory_space<vmem>>, vector<64x256xf32>
    %cst_116 = arith.constant dense<0.000000e+00> : vector<8x256xf32>
    %267 = tpu.matmul %261, %266, %cst_116 {dimension_numbers = #tpu.dot_dimension_numbers<[1], [0], [0], [1], [0, 0, 1, 1], [], []>} : vector<8x64xf32>, vector<64x256xf32>, vector<8x256xf32> -> vector<8x256xf32>
    %268 = arith.addf %265, %267 : vector<8x256xf32>
    %269 = vector.extract_strided_slice %268 {offsets = [0, 0], sizes = [8, 192], strides = [1, 1]} : vector<8x256xf32> to vector<8x192xf32>
    %270 = arith.negf %269 : vector<8x192xf32>
    %271 = math.exp %270 : vector<8x192xf32>
    %cst_117 = arith.constant 1.000000e+00 : f32
    %272 = vector.broadcast %cst_117 : f32 to vector<8x192xf32>
    %273 = arith.addf %272, %271 : vector<8x192xf32>
    %274 = arith.divf %272, %273 : vector<8x192xf32>
    %275 = vector.extract_strided_slice %268 {offsets = [0, 192], sizes = [8, 64], strides = [1, 1]} : vector<8x256xf32> to vector<8x64xf32>
    %276 = math.tanh %275 : vector<8x64xf32>
    %277 = vector.extract_strided_slice %274 {offsets = [0, 0], sizes = [8, 64], strides = [1, 1]} : vector<8x192xf32> to vector<8x64xf32>
    %278 = vector.extract_strided_slice %274 {offsets = [0, 64], sizes = [8, 64], strides = [1, 1]} : vector<8x192xf32> to vector<8x64xf32>
    %279 = vector.extract_strided_slice %274 {offsets = [0, 128], sizes = [8, 64], strides = [1, 1]} : vector<8x192xf32> to vector<8x64xf32>
    %280 = arith.mulf %278, %262 : vector<8x64xf32>
    %281 = arith.mulf %277, %276 : vector<8x64xf32>
    %282 = arith.addf %280, %281 : vector<8x64xf32>
    %283 = math.tanh %282 : vector<8x64xf32>
    %284 = arith.mulf %279, %283 : vector<8x64xf32>
    %cst_118 = arith.constant 7.000000e+00 : f32
    %cst_119 = arith.constant 0.000000e+00 : f32
    %285 = vector.broadcast %cst_118 : f32 to vector<8x64xf32>
    %286 = vector.broadcast %cst_119 : f32 to vector<8x64xf32>
    %287 = arith.select %14, %285, %286 : vector<8x64xi1>, vector<8x64xf32>
    %288 = vector.broadcast %15 : vector<8x1xf32> to vector<8x64xf32>
    %289 = arith.cmpf ogt, %288, %287 : vector<8x64xf32>
    %cst_120 = arith.constant 0.000000e+00 : f32
    %290 = vector.broadcast %cst_120 : f32 to vector<8x64xf32>
    %291 = arith.select %289, %284, %290 : vector<8x64xi1>, vector<8x64xf32>
    %292 = vector.extract_strided_slice %291 {offsets = [0, 0], sizes = [8, 32], strides = [1, 1]} : vector<8x64xf32> to vector<8x32xf32>
    %c56_121 = arith.constant 56 : index
    %c0_122 = arith.constant 0 : index
    %293 = vector.load %arg11[%c56_121, %c0_122] : memref<64x64xf32, #tpu.memory_space<vmem>>, vector<8x32xf32>
    tpu.vector_store %arg11[%c56_121, %c0_122], %292 {strides = array<i32>} : memref<64x64xf32, #tpu.memory_space<vmem>>, vector<8x32xf32>,
    %294 = vector.extract_strided_slice %291 {offsets = [0, 32], sizes = [8, 32], strides = [1, 1]} : vector<8x64xf32> to vector<8x32xf32>
    %c0_123 = arith.constant 0 : index
    %c32_124 = arith.constant 32 : index
    %295 = vector.load %arg11[%c0_123, %c32_124] : memref<64x64xf32, #tpu.memory_space<vmem>>, vector<8x32xf32>
    tpu.vector_store %arg11[%c0_123, %c32_124], %294 {strides = array<i32>} : memref<64x64xf32, #tpu.memory_space<vmem>>, vector<8x32xf32>,
    %c0_125 = arith.constant 0 : index
    %c0_126 = arith.constant 0 : index
    %296 = vector.load %arg11[%c0_125, %c0_126] : memref<64x64xf32, #tpu.memory_space<vmem>>, vector<64x64xf32>
    %c0_127 = arith.constant 0 : index
    %c0_128 = arith.constant 0 : index
    %297 = vector.load %arg5[%c0_127, %c0_128] : memref<64x32xf32, #tpu.memory_space<vmem>>, vector<64x32xf32>
    %cst_129 = arith.constant dense<0.000000e+00> : vector<64x32xf32>
    %298 = tpu.matmul %296, %297, %cst_129 {dimension_numbers = #tpu.dot_dimension_numbers<[1], [0], [0], [1], [0, 0, 1, 1], [], []>} : vector<64x64xf32>, vector<64x32xf32>, vector<64x32xf32> -> vector<64x32xf32>
    %c0_130 = arith.constant 0 : index
    %c0_131 = arith.constant 0 : index
    %299 = vector.load %arg6[%c0_130, %c0_131] : memref<1x32xf32, #tpu.memory_space<vmem>>, vector<1x32xf32>
    %300 = vector.broadcast %299 : vector<1x32xf32> to vector<64x32xf32>
    %301 = arith.addf %298, %300 : vector<64x32xf32>
    %cst_132 = arith.constant 0.000000e+00 : f32
    %302 = vector.broadcast %cst_132 : f32 to vector<64x32xf32>
    %303 = arith.maximumf %301, %302 : vector<64x32xf32>
    %c0_133 = arith.constant 0 : index
    %c0_134 = arith.constant 0 : index
    %304 = vector.load %arg7[%c0_133, %c0_134] : memref<32x128xf32, #tpu.memory_space<vmem>>, vector<32x128xf32>
    %cst_135 = arith.constant dense<0.000000e+00> : vector<64x128xf32>
    %305 = tpu.matmul %303, %304, %cst_135 {dimension_numbers = #tpu.dot_dimension_numbers<[1], [0], [0], [1], [0, 0, 1, 1], [], []>} : vector<64x32xf32>, vector<32x128xf32>, vector<64x128xf32> -> vector<64x128xf32>
    %c0_136 = arith.constant 0 : index
    %c0_137 = arith.constant 0 : index
    %306 = vector.load %arg8[%c0_136, %c0_137] : memref<1x128xf32, #tpu.memory_space<vmem>>, vector<1x128xf32>
    %307 = vector.broadcast %306 : vector<1x128xf32> to vector<64x128xf32>
    %308 = arith.addf %305, %307 : vector<64x128xf32>
    %c0_138 = arith.constant 0 : index
    %c0_139 = arith.constant 0 : index
    %309 = vector.load %arg9[%c0_138, %c0_139] : memref<64x128xf32, #tpu.memory_space<vmem>>, vector<64x128xf32>
    tpu.vector_store %arg9[%c0_138, %c0_139], %308 {strides = array<i32>} : memref<64x128xf32, #tpu.memory_space<vmem>>, vector<64x128xf32>,
    return
  }
}

</mosaic_0001>

<llo_original>
// kernel: model_forward.1
$region0: #{model_forward.1}
  #allocation0 [shape = 'u32[]', space=smem, size = 0x4, offset = 0x4, fixed_abs, tag = 'smem constant byte address 0x4 - core index']
  #allocation1 [shape = 'u32[72,128]{1,0:T(1,128)}', space=vmem, size = 0x9000, scoped, tag = 'internal scratch']
  #allocation2 [shape = 'f32[64,256]{1,0:T(8,128)}', space=vmem, size = 0x10000, scoped, tag = 'scratch operand']
  #allocation3 [shape = 'f32[64,64]{1,0:T(8,128)}', space=vmem, size = 0x8000, scoped, tag = 'scratch operand']
  %s0 = inlined_call_operand.vmem [shape: f32[64,16], index: 0, kind: input, shape index: {}]
  %s1 = inlined_call_operand.vmem [shape: f32[8,1], index: 1, kind: input, shape index: {}]
  %s2 = inlined_call_operand.vmem [shape: f32[16,256], index: 2, kind: input, shape index: {}]
  %s3 = inlined_call_operand.vmem [shape: f32[1,256], index: 3, kind: input, shape index: {}]
  %s4 = inlined_call_operand.vmem [shape: f32[64,256], index: 4, kind: input, shape index: {}]
  %s5 = inlined_call_operand.vmem [shape: f32[64,32], index: 5, kind: input, shape index: {}]
  %s6 = inlined_call_operand.vmem [shape: f32[1,32], index: 6, kind: input, shape index: {}]
  %s7 = inlined_call_operand.vmem [shape: f32[32,128], index: 7, kind: input, shape index: {}]
  %s8 = inlined_call_operand.vmem [shape: f32[1,128], index: 8, kind: input, shape index: {}]
  %s9 = inlined_call_operand.vmem [shape: f32[64,128], index: 9, kind: output, shape index: {}]
  %s10 = sld [smem:[#allocation0]]
  $region46: #{model_forward.1} parent=0
    _
  %s12 = ssub.s32 1, %s10
  %s13 = scalar_select 0, %s12, %s10
  // Predicated region
  $region2: #{model_forward.1} parent=0 // pred_check
    _
  $region3: #{model_forward.1} parent=0 // pred_check_branch
    %15 = sbr.rel (0) target = $region5
  $region4: #{model_forward.1} parent=0 // pred_region
    _
  $region5: #{model_forward.1} parent=0 // pred_fallthru
    _
  // Predicated region
  $region6: #{model_forward.1} parent=0 // pred_check
    _
  $region7: #{model_forward.1} parent=0 // pred_check_branch
    %17 = sbr.rel (0) target = $region9
  $region8: #{model_forward.1} parent=0 // pred_region
    _
  $region9: #{model_forward.1} parent=0 // pred_fallthru
    _
  // Predicated region
  $region10: #{model_forward.1} parent=0 // pred_check
    _
  $region11: #{model_forward.1} parent=0 // pred_check_branch
    %19 = sbr.rel (0) target = $region13
  $region12: #{model_forward.1} parent=0 // pred_region
    _
  $region13: #{model_forward.1} parent=0 // pred_fallthru
    _
  // Predicated region
  $region14: #{model_forward.1} parent=0 // pred_check
    _
  $region15: #{model_forward.1} parent=0 // pred_check_branch
    %21 = sbr.rel (0) target = $region17
  $region16: #{model_forward.1} parent=0 // pred_region
    _
  $region17: #{model_forward.1} parent=0 // pred_fallthru
    _
  // Predicated region
  $region18: #{model_forward.1} parent=0 // pred_check
    _
  $region19: #{model_forward.1} parent=0 // pred_check_branch
    %23 = sbr.rel (0) target = $region21
  $region20: #{model_forward.1} parent=0 // pred_region
    _
  $region21: #{model_forward.1} parent=0 // pred_fallthru
    _
  // Predicated region
  $region22: #{model_forward.1} parent=0 // pred_check
    _
  $region23: #{model_forward.1} parent=0 // pred_check_branch
    %25 = sbr.rel (0) target = $region25
  $region24: #{model_forward.1} parent=0 // pred_region
    _
  $region25: #{model_forward.1} parent=0 // pred_fallthru
    _
  // Predicated region
  $region26: #{model_forward.1} parent=0 // pred_check
    _
  $region27: #{model_forward.1} parent=0 // pred_check_branch
    %27 = sbr.rel (0) target = $region29
  $region28: #{model_forward.1} parent=0 // pred_region
    _
  $region29: #{model_forward.1} parent=0 // pred_fallthru
    _
  // Predicated region
  $region30: #{model_forward.1} parent=0 // pred_check
    _
  $region31: #{model_forward.1} parent=0 // pred_check_branch
    %29 = sbr.rel (0) target = $region33
  $region32: #{model_forward.1} parent=0 // pred_region
    _
  $region33: #{model_forward.1} parent=0 // pred_fallthru
    _
  // Predicated region
  $region34: #{model_forward.1} parent=0 // pred_check
    _
  $region35: #{model_forward.1} parent=0 // pred_check_branch
    %31 = sbr.rel (0) target = $region37
  $region36: #{model_forward.1} parent=0 // pred_region
    _
  $region37: #{model_forward.1} parent=0 // pred_fallthru
    _
  %v32 = vld [vmem:[%s0] sm:$0xff]
  %v33 = vld [vmem:[%s0 + $0x8] sm:$0xff]
  %v34 = vld [vmem:[%s0 + $0x10] sm:$0xff]
  %v35 = vld [vmem:[%s0 + $0x18] sm:$0xff]
  %v36 = vld [vmem:[%s0 + $0x20] sm:$0xff]
  %v37 = vld [vmem:[%s0 + $0x28] sm:$0xff]
  %v38 = vld [vmem:[%s0 + $0x30] sm:$0xff]
  %v39 = vld [vmem:[%s0 + $0x38] sm:$0xff]
  %v40 = vld [vmem:[%s2] sm:$0xff]
  %v41 = vld [vmem:[%s2 + $0x8] sm:$0xff]
  %v42 = vld [vmem:[%s2 + $0x10] sm:$0xff]
  %v43 = vld [vmem:[%s2 + $0x18] sm:$0xff]
  %v44 = vld [vmem:[%s3] sm:$0x3]
  %v46 = vperm.slane %v44, 0
  %v47 = vperm.slane %v44, 1
  %vm50 = vcmask 130048
  %v52 = vsel %vm50, %v32, 0
  %v55 = vsel %vm50, %v33, 0
  %v58 = vsel %vm50, %v34, 0
  %v61 = vsel %vm50, %v35, 0
  %v64 = vsel %vm50, %v36, 0
  %v67 = vsel %vm50, %v37, 0
  %v70 = vsel %vm50, %v38, 0
  %v73 = vsel %vm50, %v39, 0
  %75 = vmatpush.msra.mxu0 0.0
  %76 = vmatpush.msra.mxu0 0.0
  %77 = vmatpush.msra.mxu0 0.0
  %78 = vmatpush.msra.mxu0 0.0
  %79 = vmatpush.msra.mxu0 0.0
  %80 = vmatpush.msra.mxu0 0.0
  %81 = vmatpush.msra.mxu0 0.0
  %82 = vmatpush.msra.mxu0 0.0
  %83 = vmatpush.msra.mxu0 0.0
  %84 = vmatpush.msra.mxu0 0.0
  %85 = vmatpush.msra.mxu0 0.0
  %86 = vmatpush.msra.mxu0 0.0
  %87 = vmatpush.msra.mxu0 0.0
  %88 = vmatpush.msra.mxu0 0.0
  %89 = vmatpush.msra.mxu0 %v42
  %90 = vmatpush.msra.mxu0 %v40
  %91 = vmatmul.f32.gmra.mxu0 %v52
  %v92 = vpop.f32.mrf.mxu0
  %v93 = vadd.f32 %v46, %v92
  %94 = vmatmul.f32.gmra.mxu0 %v55
  %v95 = vpop.f32.mrf.mxu0
  %v96 = vadd.f32 %v46, %v95
  %97 = vmatmul.f32.gmra.mxu0 %v58
  %v98 = vpop.f32.mrf.mxu0
  %v99 = vadd.f32 %v46, %v98
  %100 = vmatmul.f32.gmra.mxu0 %v61
  %v101 = vpop.f32.mrf.mxu0
  %v102 = vadd.f32 %v46, %v101
  %103 = vmatmul.f32.gmra.mxu0 %v64
  %v104 = vpop.f32.mrf.mxu0
  %v105 = vadd.f32 %v46, %v104
  %106 = vmatmul.f32.gmra.mxu0 %v67
  %v107 = vpop.f32.mrf.mxu0
  %v108 = vadd.f32 %v46, %v107
  %109 = vmatmul.f32.gmra.mxu0 %v70
  %v110 = vpop.f32.mrf.mxu0
  %v111 = vadd.f32 %v46, %v110
  %112 = vmatmul.f32.gmra.mxu0 %v73
  %v113 = vpop.f32.mrf.mxu0
  %v114 = vadd.f32 %v46, %v113
  %115 = vdwg.mxu0
  %116 = vmatpush.msra.mxu0 0.0
  %117 = vmatpush.msra.mxu0 0.0
  %118 = vmatpush.msra.mxu0 0.0
  %119 = vmatpush.msra.mxu0 0.0
  %120 = vmatpush.msra.mxu0 0.0
  %121 = vmatpush.msra.mxu0 0.0
  %122 = vmatpush.msra.mxu0 0.0
  %123 = vmatpush.msra.mxu0 0.0
  %124 = vmatpush.msra.mxu0 0.0
  %125 = vmatpush.msra.mxu0 0.0
  %126 = vmatpush.msra.mxu0 0.0
  %127 = vmatpush.msra.mxu0 0.0
  %128 = vmatpush.msra.mxu0 0.0
  %129 = vmatpush.msra.mxu0 0.0
  %130 = vmatpush.msra.mxu0 %v43
  %131 = vmatpush.msra.mxu0 %v41
  %132 = vmatmul.f32.gmra.mxu0 %v52
  %v133 = vpop.f32.mrf.mxu0
  %v134 = vadd.f32 %v47, %v133
  %135 = vmatmul.f32.gmra.mxu0 %v55
  %v136 = vpop.f32.mrf.mxu0
  %v137 = vadd.f32 %v47, %v136
  %138 = vmatmul.f32.gmra.mxu0 %v58
  %v139 = vpop.f32.mrf.mxu0
  %v140 = vadd.f32 %v47, %v139
  %141 = vmatmul.f32.gmra.mxu0 %v61
  %v142 = vpop.f32.mrf.mxu0
  %v143 = vadd.f32 %v47, %v142
  %144 = vmatmul.f32.gmra.mxu0 %v64
  %v145 = vpop.f32.mrf.mxu0
  %v146 = vadd.f32 %v47, %v145
  %147 = vmatmul.f32.gmra.mxu0 %v67
  %v148 = vpop.f32.mrf.mxu0
  %v149 = vadd.f32 %v47, %v148
  %150 = vmatmul.f32.gmra.mxu0 %v70
  %v151 = vpop.f32.mrf.mxu0
  %v152 = vadd.f32 %v47, %v151
  %153 = vmatmul.f32.gmra.mxu0 %v73
  %v154 = vpop.f32.mrf.mxu0
  %v155 = vadd.f32 %v47, %v154
  %156 = vdwg.mxu0
  %157 = vst [vmem:[#allocation2] sm:$0xff] %v93
  %158 = vst [vmem:[#allocation2 + $0x8] sm:$0xff] %v134
  %159 = vst [vmem:[#allocation2 + $0x10] sm:$0xff] %v96
  %160 = vst [vmem:[#allocation2 + $0x18] sm:$0xff] %v137
  %161 = vst [vmem:[#allocation2 + $0x20] sm:$0xff] %v99
  %162 = vst [vmem:[#allocation2 + $0x28] sm:$0xff] %v140
  %163 = vst [vmem:[#allocation2 + $0x30] sm:$0xff] %v102
  %164 = vst [vmem:[#allocation2 + $0x38] sm:$0xff] %v143
  %165 = vst [vmem:[#allocation2 + $0x40] sm:$0xff] %v105
  %166 = vst [vmem:[#allocation2 + $0x48] sm:$0xff] %v146
  %167 = vst [vmem:[#allocation2 + $0x50] sm:$0xff] %v108
  %168 = vst [vmem:[#allocation2 + $0x58] sm:$0xff] %v149
  %169 = vst [vmem:[#allocation2 + $0x60] sm:$0xff] %v111
  %170 = vst [vmem:[#allocation2 + $0x68] sm:$0xff] %v152
  %171 = vst [vmem:[#allocation2 + $0x70] sm:$0xff] %v114
  %172 = vst [vmem:[#allocation2 + $0x78] sm:$0xff] %v155
  %v173 = vlaneseq
  %v174 = vand.u32 %v173, 127
  %v175 = vadd.s32 %v174, 128
  %v176 = vand.u32 %v174, 32
  %v177 = vand.u32 %v175, 32
  %vm178 = vcmp.eq.s32.totalorder %v176, 0
  %vm179 = vcmp.eq.s32.totalorder %v177, 0
  %vm180 = vcmp.lt.s32.totalorder %v174, 32
  %v181 = vld [vmem:[%s1] sm:$0xff]
  %v182 = vld [vmem:[#allocation2] sm:$0xff]
  %v183 = vld [vmem:[#allocation2 + $0x8] sm:$0xff]
  %v184 = vld [vmem:[#allocation2 + $0x70] sm:$0xff]
  %v185 = vld [vmem:[#allocation2 + $0x78] sm:$0xff]
  %v186 = vsel %vm178, %v182, %v184
  %v187 = vsel %vm179, %v183, %v185
  %v188 = vld [vmem:[%s4] sm:$0xff]
  %v189 = vld [vmem:[%s4 + $0x8] sm:$0xff]
  %v190 = vld [vmem:[%s4 + $0x10] sm:$0xff]
  %v191 = vld [vmem:[%s4 + $0x18] sm:$0xff]
  %v192 = vld [vmem:[%s4 + $0x20] sm:$0xff]
  %v193 = vld [vmem:[%s4 + $0x28] sm:$0xff]
  %v194 = vld [vmem:[%s4 + $0x30] sm:$0xff]
  %v195 = vld [vmem:[%s4 + $0x38] sm:$0xff]
  %v196 = vld [vmem:[%s4 + $0x40] sm:$0xff]
  %v197 = vld [vmem:[%s4 + $0x48] sm:$0xff]
  %v198 = vld [vmem:[%s4 + $0x50] sm:$0xff]
  %v199 = vld [vmem:[%s4 + $0x58] sm:$0xff]
  %v200 = vld [vmem:[%s4 + $0x60] sm:$0xff]
  %v201 = vld [vmem:[%s4 + $0x68] sm:$0xff]
  %v202 = vld [vmem:[%s4 + $0x70] sm:$0xff]
  %v203 = vld [vmem:[%s4 + $0x78] sm:$0xff]
  %vm204 = vcmask 523264
  %v206 = vsel %vm204, 0.0, 0
  %208 = vmatpush.msra.mxu0 0.0
  %209 = vmatpush.msra.mxu0 0.0
  %210 = vmatpush.msra.mxu0 0.0
  %211 = vmatpush.msra.mxu0 0.0
  %212 = vmatpush.msra.mxu0 0.0
  %213 = vmatpush.msra.mxu0 0.0
  %214 = vmatpush.msra.mxu0 0.0
  %215 = vmatpush.msra.mxu0 0.0
  %216 = vmatpush.msra.mxu0 %v202
  %217 = vmatpush.msra.mxu0 %v200
  %218 = vmatpush.msra.mxu0 %v198
  %219 = vmatpush.msra.mxu0 %v196
  %220 = vmatpush.msra.mxu0 %v194
  %221 = vmatpush.msra.mxu0 %v192
  %222 = vmatpush.msra.mxu0 %v190
  %223 = vmatpush.msra.mxu0 %v188
  %224 = vmatmul.f32.gmra.mxu0 %v206
  %v225 = vpop.f32.mrf.mxu0
  %v226 = vadd.f32 0.0, %v225
  %227 = vdwg.mxu0
  %228 = vmatpush.msra.mxu0 0.0
  %229 = vmatpush.msra.mxu0 0.0
  %230 = vmatpush.msra.mxu0 0.0
  %231 = vmatpush.msra.mxu0 0.0
  %232 = vmatpush.msra.mxu0 0.0
  %233 = vmatpush.msra.mxu0 0.0
  %234 = vmatpush.msra.mxu0 0.0
  %235 = vmatpush.msra.mxu0 0.0
  %236 = vmatpush.msra.mxu0 %v203
  %237 = vmatpush.msra.mxu0 %v201
  %238 = vmatpush.msra.mxu0 %v199
  %239 = vmatpush.msra.mxu0 %v197
  %240 = vmatpush.msra.mxu0 %v195
  %241 = vmatpush.msra.mxu0 %v193
  %242 = vmatpush.msra.mxu0 %v191
  %243 = vmatpush.msra.mxu0 %v189
  %244 = vmatmul.f32.gmra.mxu0 %v206
  %v245 = vpop.f32.mrf.mxu0
  %v246 = vadd.f32 0.0, %v245
  %247 = vdwg.mxu0
  %v248 = vadd.f32 %v186, %v226
  %v249 = vadd.f32 %v187, %v246
  %v250 = vxor.u32 %v248, 2147483648
  %v251 = vxor.u32 %v249, 2147483648
  %v252 = vmul.f32 %v250, 1.442695
  %v253 = vpow.pop %v252
  %v254 = vmul.f32 %v251, 1.442695
  %v255 = vpow.pop %v254
  %v256 = vadd.f32 %v253, 1.0
  %v257 = vadd.f32 %v255, 1.0
  %v258 = vrcp.pop %v256
  %v259 = vmul.f32 %v256, %v258
  %v260 = vsub.f32 1.0, %v259
  %v261 = vmul.f32 %v258, %v260
  %v262 = vadd.f32 %v258, %v261
  %vm263 = vweird.f32 %v256
  %vm264 = vweird.f32 %v258
  %vm265 = vmor %vm263, %vm264
  %v266 = vsel %vm265, %v258, %v262
  %v267 = vand.u32 2147483647, %v256
  %vm268 = vcmp.eq.f32.partialorder %v267, 8.507059e+37
  %v269 = vand.u32 %v256, 2147483648
  %v270 = vor.u32 1.1754944e-38, %v269
  %v271 = vsel %vm268, %v270, %v266
  %v272 = vmul.f32 1.0, %v271
  %v273 = vrcp.pop %v257
  %v274 = vmul.f32 %v257, %v273
  %v275 = vsub.f32 1.0, %v274
  %v276 = vmul.f32 %v273, %v275
  %v277 = vadd.f32 %v273, %v276
  %vm278 = vweird.f32 %v257
  %vm279 = vweird.f32 %v273
  %vm280 = vmor %vm278, %vm279
  %v281 = vsel %vm280, %v273, %v277
  %v282 = vand.u32 2147483647, %v257
  %vm283 = vcmp.eq.f32.partialorder %v282, 8.507059e+37
  %v284 = vand.u32 %v257, 2147483648
  %v285 = vor.u32 1.1754944e-38, %v284
  %v286 = vsel %vm283, %v285, %v281
  %v287 = vmul.f32 1.0, %v286
  %v288 = vtanh.pop %v249
  %v289 = vmul.f32 %v272, 0.0
  %291 = vrot.lane.b32.xlu0 %v288, 64
  %v292 = vpop.permute.xlu0 %291
  %v294 = vmul.f32 %v272, %v292
  %296 = vrot.lane.b32.xlu0 %v294, 64
  %v297 = vpop.permute.xlu0 %296
  %v299 = vadd.f32 %v289, %v297
  %v300 = vtanh.pop %v299
  %302 = vrot.lane.b32.xlu0 %v300, 64
  %v303 = vpop.permute.xlu0 %302
  %v305 = vmul.f32 %v287, %v303
  %v306 = vsel %vm180, 0.0, 7.0
  %308 = vset.pattern.permute.xlu0 0
  %309 = vperm.xlu0 %308, %v181
  %v310 = vpop.permute.xlu0 %309
  %vm312 = vcmp.gt.f32.partialorder %v310, %v306
  %v313 = vsel %vm312, %v305, 0.0
  %vm314 = vcmask 261120
  %315 = vst.msk [vmem:[#allocation3] sm:$0xff] %vm314, %v313
  %vm316 = vcmask 523520
  %317 = vst.msk [vmem:[#allocation3 + $0x38] sm:$0xff] %vm316, %v313
  %319 = vrot.lane.b32.xlu0 %v299, 64
  %v320 = vpop.permute.xlu0 %319
  %v322 = vsel %vm312, %v320, 0.0
  %v323 = vld [vmem:[#allocation2 + $0x10] sm:$0xff]
  %v324 = vld [vmem:[#allocation2 + $0x18] sm:$0xff]
  %v325 = vld [vmem:[#allocation2 + $0x60] sm:$0xff]
  %v326 = vld [vmem:[#allocation2 + $0x68] sm:$0xff]
  %v327 = vsel %vm178, %v323, %v325
  %v328 = vsel %vm179, %v324, %v326
  %v329 = vld [vmem:[%s4] sm:$0xff]
  %v330 = vld [vmem:[%s4 + $0x8] sm:$0xff]
  %v331 = vld [vmem:[%s4 + $0x10] sm:$0xff]
  %v332 = vld [vmem:[%s4 + $0x18] sm:$0xff]
  %v333 = vld [vmem:[%s4 + $0x20] sm:$0xff]
  %v334 = vld [vmem:[%s4 + $0x28] sm:$0xff]
  %v335 = vld [vmem:[%s4 + $0x30] sm:$0xff]
  %v336 = vld [vmem:[%s4 + $0x38] sm:$0xff]
  %v337 = vld [vmem:[%s4 + $0x40] sm:$0xff]
  %v338 = vld [vmem:[%s4 + $0x48] sm:$0xff]
  %v339 = vld [vmem:[%s4 + $0x50] sm:$0xff]
  %v340 = vld [vmem:[%s4 + $0x58] sm:$0xff]
  %v341 = vld [vmem:[%s4 + $0x60] sm:$0xff]
  %v342 = vld [vmem:[%s4 + $0x68] sm:$0xff]
  %v343 = vld [vmem:[%s4 + $0x70] sm:$0xff]
  %v344 = vld [vmem:[%s4 + $0x78] sm:$0xff]
  %v346 = vsel %vm204, %v313, 0
  %348 = vmatpush.msra.mxu0 0.0
  %349 = vmatpush.msra.mxu0 0.0
  %350 = vmatpush.msra.mxu0 0.0
  %351 = vmatpush.msra.mxu0 0.0
  %352 = vmatpush.msra.mxu0 0.0
  %353 = vmatpush.msra.mxu0 0.0
  %354 = vmatpush.msra.mxu0 0.0
  %355 = vmatpush.msra.mxu0 0.0
  %356 = vmatpush.msra.mxu0 %v343
  %357 = vmatpush.msra.mxu0 %v341
  %358 = vmatpush.msra.mxu0 %v339
  %359 = vmatpush.msra.mxu0 %v337
  %360 = vmatpush.msra.mxu0 %v335
  %361 = vmatpush.msra.mxu0 %v333
  %362 = vmatpush.msra.mxu0 %v331
  %363 = vmatpush.msra.mxu0 %v329
  %364 = vmatmul.f32.gmra.mxu0 %v346
  %v365 = vpop.f32.mrf.mxu0
  %v366 = vadd.f32 0.0, %v365
  %367 = vdwg.mxu0
  %368 = vmatpush.msra.mxu0 0.0
  %369 = vmatpush.msra.mxu0 0.0
  %370 = vmatpush.msra.mxu0 0.0
  %371 = vmatpush.msra.mxu0 0.0
  %372 = vmatpush.msra.mxu0 0.0
  %373 = vmatpush.msra.mxu0 0.0
  %374 = vmatpush.msra.mxu0 0.0
  %375 = vmatpush.msra.mxu0 0.0
  %376 = vmatpush.msra.mxu0 %v344
  %377 = vmatpush.msra.mxu0 %v342
  %378 = vmatpush.msra.mxu0 %v340
  %379 = vmatpush.msra.mxu0 %v338
  %380 = vmatpush.msra.mxu0 %v336
  %381 = vmatpush.msra.mxu0 %v334
  %382 = vmatpush.msra.mxu0 %v332
  %383 = vmatpush.msra.mxu0 %v330
  %384 = vmatmul.f32.gmra.mxu0 %v346
  %v385 = vpop.f32.mrf.mxu0
  %v386 = vadd.f32 0.0, %v385
  %387 = vdwg.mxu0
  %v388 = vadd.f32 %v327, %v366
  %v389 = vadd.f32 %v328, %v386
  %v390 = vxor.u32 %v388, 2147483648
  %v391 = vxor.u32 %v389, 2147483648
  %v392 = vmul.f32 %v390, 1.442695
  %v393 = vpow.pop %v392
  %v394 = vmul.f32 %v391, 1.442695
  %v395 = vpow.pop %v394
  %v396 = vadd.f32 %v393, 1.0
  %v397 = vadd.f32 %v395, 1.0
  %v398 = vrcp.pop %v396
  %v399 = vmul.f32 %v396, %v398
  %v400 = vsub.f32 1.0, %v399
  %v401 = vmul.f32 %v398, %v400
  %v402 = vadd.f32 %v398, %v401
  %vm403 = vweird.f32 %v396
  %vm404 = vweird.f32 %v398
  %vm405 = vmor %vm403, %vm404
  %v406 = vsel %vm405, %v398, %v402
  %v407 = vand.u32 2147483647, %v396
  %vm408 = vcmp.eq.f32.partialorder %v407, 8.507059e+37
  %v409 = vand.u32 %v396, 2147483648
  %v410 = vor.u32 1.1754944e-38, %v409
  %v411 = vsel %vm408, %v410, %v406
  %v412 = vmul.f32 1.0, %v411
  %v413 = vrcp.pop %v397
  %v414 = vmul.f32 %v397, %v413
  %v415 = vsub.f32 1.0, %v414
  %v416 = vmul.f32 %v413, %v415
  %v417 = vadd.f32 %v413, %v416
  %vm418 = vweird.f32 %v397
  %vm419 = vweird.f32 %v413
  %vm420 = vmor %vm418, %vm419
  %v421 = vsel %vm420, %v413, %v417
  %v422 = vand.u32 2147483647, %v397
  %vm423 = vcmp.eq.f32.partialorder %v422, 8.507059e+37
  %v424 = vand.u32 %v397, 2147483648
  %v425 = vor.u32 1.1754944e-38, %v424
  %v426 = vsel %vm423, %v425, %v421
  %v427 = vmul.f32 1.0, %v426
  %v428 = vtanh.pop %v389
  %430 = vrot.lane.b32.xlu0 %v322, 64
  %v431 = vpop.permute.xlu0 %430
  %v433 = vmul.f32 %v412, %v431
  %435 = vrot.lane.b32.xlu0 %v428, 64
  %v436 = vpop.permute.xlu0 %435
  %v438 = vmul.f32 %v412, %v436
  %440 = vrot.lane.b32.xlu0 %v438, 64
  %v441 = vpop.permute.xlu0 %440
  %v443 = vadd.f32 %v433, %v441
  %v444 = vtanh.pop %v443
  %446 = vrot.lane.b32.xlu0 %v444, 64
  %v447 = vpop.permute.xlu0 %446
  %v449 = vmul.f32 %v427, %v447
  %v450 = vsel %vm180, 1.0, 6.0
  %vm451 = vcmp.gt.f32.partialorder %v310, %v450
  %v452 = vsel %vm451, %v449, 0.0
  %453 = vst.msk [vmem:[#allocation3 + $0x8] sm:$0xff] %vm314, %v452
  %454 = vst.msk [vmem:[#allocation3 + $0x30] sm:$0xff] %vm316, %v452
  %v455 = vsel %vm451, %v449, %v313
  %457 = vrot.lane.b32.xlu0 %v443, 64
  %v458 = vpop.permute.xlu0 %457
  %v460 = vsel %vm451, %v458, %v322
  %v461 = vld [vmem:[#allocation2 + $0x20] sm:$0xff]
  %v462 = vld [vmem:[#allocation2 + $0x28] sm:$0xff]
  %v463 = vld [vmem:[#allocation2 + $0x50] sm:$0xff]
  %v464 = vld [vmem:[#allocation2 + $0x58] sm:$0xff]
  %v465 = vsel %vm178, %v461, %v463
  %v466 = vsel %vm179, %v462, %v464
  %v467 = vld [vmem:[%s4] sm:$0xff]
  %v468 = vld [vmem:[%s4 + $0x8] sm:$0xff]
  %v469 = vld [vmem:[%s4 + $0x10] sm:$0xff]
  %v470 = vld [vmem:[%s4 + $0x18] sm:$0xff]
  %v471 = vld [vmem:[%s4 + $0x20] sm:$0xff]
  %v472 = vld [vmem:[%s4 + $0x28] sm:$0xff]
  %v473 = vld [vmem:[%s4 + $0x30] sm:$0xff]
  %v474 = vld [vmem:[%s4 + $0x38] sm:$0xff]
  %v475 = vld [vmem:[%s4 + $0x40] sm:$0xff]
  %v476 = vld [vmem:[%s4 + $0x48] sm:$0xff]
  %v477 = vld [vmem:[%s4 + $0x50] sm:$0xff]
  %v478 = vld [vmem:[%s4 + $0x58] sm:$0xff]
  %v479 = vld [vmem:[%s4 + $0x60] sm:$0xff]
  %v480 = vld [vmem:[%s4 + $0x68] sm:$0xff]
  %v481 = vld [vmem:[%s4 + $0x70] sm:$0xff]
  %v482 = vld [vmem:[%s4 + $0x78] sm:$0xff]
  %v484 = vsel %vm204, %v455, 0
  %486 = vmatpush.msra.mxu0 0.0
  %487 = vmatpush.msra.mxu0 0.0
  %488 = vmatpush.msra.mxu0 0.0
  %489 = vmatpush.msra.mxu0 0.0
  %490 = vmatpush.msra.mxu0 0.0
  %491 = vmatpush.msra.mxu0 0.0
  %492 = vmatpush.msra.mxu0 0.0
  %493 = vmatpush.msra.mxu0 0.0
  %494 = vmatpush.msra.mxu0 %v481
  %495 = vmatpush.msra.mxu0 %v479
  %496 = vmatpush.msra.mxu0 %v477
  %497 = vmatpush.msra.mxu0 %v475
  %498 = vmatpush.msra.mxu0 %v473
  %499 = vmatpush.msra.mxu0 %v471
  %500 = vmatpush.msra.mxu0 %v469
  %501 = vmatpush.msra.mxu0 %v467
  %502 = vmatmul.f32.gmra.mxu0 %v484
  %v503 = vpop.f32.mrf.mxu0
  %v504 = vadd.f32 0.0, %v503
  %505 = vdwg.mxu0
  %506 = vmatpush.msra.mxu0 0.0
  %507 = vmatpush.msra.mxu0 0.0
  %508 = vmatpush.msra.mxu0 0.0
  %509 = vmatpush.msra.mxu0 0.0
  %510 = vmatpush.msra.mxu0 0.0
  %511 = vmatpush.msra.mxu0 0.0
  %512 = vmatpush.msra.mxu0 0.0
  %513 = vmatpush.msra.mxu0 0.0
  %514 = vmatpush.msra.mxu0 %v482
  %515 = vmatpush.msra.mxu0 %v480
  %516 = vmatpush.msra.mxu0 %v478
  %517 = vmatpush.msra.mxu0 %v476
  %518 = vmatpush.msra.mxu0 %v474
  %519 = vmatpush.msra.mxu0 %v472
  %520 = vmatpush.msra.mxu0 %v470
  %521 = vmatpush.msra.mxu0 %v468
  %522 = vmatmul.f32.gmra.mxu0 %v484
  %v523 = vpop.f32.mrf.mxu0
  %v524 = vadd.f32 0.0, %v523
  %525 = vdwg.mxu0
  %v526 = vadd.f32 %v465, %v504
  %v527 = vadd.f32 %v466, %v524
  %v528 = vxor.u32 %v526, 2147483648
  %v529 = vxor.u32 %v527, 2147483648
  %v530 = vmul.f32 %v528, 1.442695
  %v531 = vpow.pop %v530
  %v532 = vmul.f32 %v529, 1.442695
  %v533 = vpow.pop %v532
  %v534 = vadd.f32 %v531, 1.0
  %v535 = vadd.f32 %v533, 1.0
  %v536 = vrcp.pop %v534
  %v537 = vmul.f32 %v534, %v536
  %v538 = vsub.f32 1.0, %v537
  %v539 = vmul.f32 %v536, %v538
  %v540 = vadd.f32 %v536, %v539
  %vm541 = vweird.f32 %v534
  %vm542 = vweird.f32 %v536
  %vm543 = vmor %vm541, %vm542
  %v544 = vsel %vm543, %v536, %v540
  %v545 = vand.u32 2147483647, %v534
  %vm546 = vcmp.eq.f32.partialorder %v545, 8.507059e+37
  %v547 = vand.u32 %v534, 2147483648
  %v548 = vor.u32 1.1754944e-38, %v547
  %v549 = vsel %vm546, %v548, %v544
  %v550 = vmul.f32 1.0, %v549
  %v551 = vrcp.pop %v535
  %v552 = vmul.f32 %v535, %v551
  %v553 = vsub.f32 1.0, %v552
  %v554 = vmul.f32 %v551, %v553
  %v555 = vadd.f32 %v551, %v554
  %vm556 = vweird.f32 %v535
  %vm557 = vweird.f32 %v551
  %vm558 = vmor %vm556, %vm557
  %v559 = vsel %vm558, %v551, %v555
  %v560 = vand.u32 2147483647, %v535
  %vm561 = vcmp.eq.f32.partialorder %v560, 8.507059e+37
  %v562 = vand.u32 %v535, 2147483648
  %v563 = vor.u32 1.1754944e-38, %v562
  %v564 = vsel %vm561, %v563, %v559
  %v565 = vmul.f32 1.0, %v564
  %v566 = vtanh.pop %v527
  %568 = vrot.lane.b32.xlu0 %v460, 64
  %v569 = vpop.permute.xlu0 %568
  %v571 = vmul.f32 %v550, %v569
  %573 = vrot.lane.b32.xlu0 %v566, 64
  %v574 = vpop.permute.xlu0 %573
  %v576 = vmul.f32 %v550, %v574
  %578 = vrot.lane.b32.xlu0 %v576, 64
  %v579 = vpop.permute.xlu0 %578
  %v581 = vadd.f32 %v571, %v579
  %v582 = vtanh.pop %v581
  %584 = vrot.lane.b32.xlu0 %v582, 64
  %v585 = vpop.permute.xlu0 %584
  %v587 = vmul.f32 %v565, %v585
  %v588 = vsel %vm180, 2.0, 5.0
  %vm589 = vcmp.gt.f32.partialorder %v310, %v588
  %v590 = vsel %vm589, %v587, 0.0
  %591 = vst.msk [vmem:[#allocation3 + $0x10] sm:$0xff] %vm314, %v590
  %592 = vst.msk [vmem:[#allocation3 + $0x28] sm:$0xff] %vm316, %v590
  %v593 = vsel %vm589, %v587, %v455
  %595 = vrot.lane.b32.xlu0 %v581, 64
  %v596 = vpop.permute.xlu0 %595
  %v598 = vsel %vm589, %v596, %v460
  %v599 = vld [vmem:[#allocation2 + $0x30] sm:$0xff]
  %v600 = vld [vmem:[#allocation2 + $0x38] sm:$0xff]
  %v601 = vld [vmem:[#allocation2 + $0x40] sm:$0xff]
  %v602 = vld [vmem:[#allocation2 + $0x48] sm:$0xff]
  %v603 = vsel %vm178, %v599, %v601
  %v604 = vsel %vm179, %v600, %v602
  %v605 = vld [vmem:[%s4] sm:$0xff]
  %v606 = vld [vmem:[%s4 + $0x8] sm:$0xff]
  %v607 = vld [vmem:[%s4 + $0x10] sm:$0xff]
  %v608 = vld [vmem:[%s4 + $0x18] sm:$0xff]
  %v609 = vld [vmem:[%s4 + $0x20] sm:$0xff]
  %v610 = vld [vmem:[%s4 + $0x28] sm:$0xff]
  %v611 = vld [vmem:[%s4 + $0x30] sm:$0xff]
  %v612 = vld [vmem:[%s4 + $0x38] sm:$0xff]
  %v613 = vld [vmem:[%s4 + $0x40] sm:$0xff]
  %v614 = vld [vmem:[%s4 + $0x48] sm:$0xff]
  %v615 = vld [vmem:[%s4 + $0x50] sm:$0xff]
  %v616 = vld [vmem:[%s4 + $0x58] sm:$0xff]
  %v617 = vld [vmem:[%s4 + $0x60] sm:$0xff]
  %v618 = vld [vmem:[%s4 + $0x68] sm:$0xff]
  %v619 = vld [vmem:[%s4 + $0x70] sm:$0xff]
  %v620 = vld [vmem:[%s4 + $0x78] sm:$0xff]
  %v622 = vsel %vm204, %v593, 0
  %624 = vmatpush.msra.mxu0 0.0
  %625 = vmatpush.msra.mxu0 0.0
  %626 = vmatpush.msra.mxu0 0.0
  %627 = vmatpush.msra.mxu0 0.0
  %628 = vmatpush.msra.mxu0 0.0
  %629 = vmatpush.msra.mxu0 0.0
  %630 = vmatpush.msra.mxu0 0.0
  %631 = vmatpush.msra.mxu0 0.0
  %632 = vmatpush.msra.mxu0 %v619
  %633 = vmatpush.msra.mxu0 %v617
  %634 = vmatpush.msra.mxu0 %v615
  %635 = vmatpush.msra.mxu0 %v613
  %636 = vmatpush.msra.mxu0 %v611
  %637 = vmatpush.msra.mxu0 %v609
  %638 = vmatpush.msra.mxu0 %v607
  %639 = vmatpush.msra.mxu0 %v605
  %640 = vmatmul.f32.gmra.mxu0 %v622
  %v641 = vpop.f32.mrf.mxu0
  %v642 = vadd.f32 0.0, %v641
  %643 = vdwg.mxu0
  %644 = vmatpush.msra.mxu0 0.0
  %645 = vmatpush.msra.mxu0 0.0
  %646 = vmatpush.msra.mxu0 0.0
  %647 = vmatpush.msra.mxu0 0.0
  %648 = vmatpush.msra.mxu0 0.0
  %649 = vmatpush.msra.mxu0 0.0
  %650 = vmatpush.msra.mxu0 0.0
  %651 = vmatpush.msra.mxu0 0.0
  %652 = vmatpush.msra.mxu0 %v620
  %653 = vmatpush.msra.mxu0 %v618
  %654 = vmatpush.msra.mxu0 %v616
  %655 = vmatpush.msra.mxu0 %v614
  %656 = vmatpush.msra.mxu0 %v612
  %657 = vmatpush.msra.mxu0 %v610
  %658 = vmatpush.msra.mxu0 %v608
  %659 = vmatpush.msra.mxu0 %v606
  %660 = vmatmul.f32.gmra.mxu0 %v622
  %v661 = vpop.f32.mrf.mxu0
  %v662 = vadd.f32 0.0, %v661
  %663 = vdwg.mxu0
  %v664 = vadd.f32 %v603, %v642
  %v665 = vadd.f32 %v604, %v662
  %v666 = vxor.u32 %v664, 2147483648
  %v667 = vxor.u32 %v665, 2147483648
  %v668 = vmul.f32 %v666, 1.442695
  %v669 = vpow.pop %v668
  %v670 = vmul.f32 %v667, 1.442695
  %v671 = vpow.pop %v670
  %v672 = vadd.f32 %v669, 1.0
  %v673 = vadd.f32 %v671, 1.0
  %v674 = vrcp.pop %v672
  %v675 = vmul.f32 %v672, %v674
  %v676 = vsub.f32 1.0, %v675
  %v677 = vmul.f32 %v674, %v676
  %v678 = vadd.f32 %v674, %v677
  %vm679 = vweird.f32 %v672
  %vm680 = vweird.f32 %v674
  %vm681 = vmor %vm679, %vm680
  %v682 = vsel %vm681, %v674, %v678
  %v683 = vand.u32 2147483647, %v672
  %vm684 = vcmp.eq.f32.partialorder %v683, 8.507059e+37
  %v685 = vand.u32 %v672, 2147483648
  %v686 = vor.u32 1.1754944e-38, %v685
  %v687 = vsel %vm684, %v686, %v682
  %v688 = vmul.f32 1.0, %v687
  %v689 = vrcp.pop %v673
  %v690 = vmul.f32 %v673, %v689
  %v691 = vsub.f32 1.0, %v690
  %v692 = vmul.f32 %v689, %v691
  %v693 = vadd.f32 %v689, %v692
  %vm694 = vweird.f32 %v673
  %vm695 = vweird.f32 %v689
  %vm696 = vmor %vm694, %vm695
  %v697 = vsel %vm696, %v689, %v693
  %v698 = vand.u32 2147483647, %v673
  %vm699 = vcmp.eq.f32.partialorder %v698, 8.507059e+37
  %v700 = vand.u32 %v673, 2147483648
  %v701 = vor.u32 1.1754944e-38, %v700
  %v702 = vsel %vm699, %v701, %v697
  %v703 = vmul.f32 1.0, %v702
  %v704 = vtanh.pop %v665
  %706 = vrot.lane.b32.xlu0 %v598, 64
  %v707 = vpop.permute.xlu0 %706
  %v709 = vmul.f32 %v688, %v707
  %711 = vrot.lane.b32.xlu0 %v704, 64
  %v712 = vpop.permute.xlu0 %711
  %v714 = vmul.f32 %v688, %v712
  %716 = vrot.lane.b32.xlu0 %v714, 64
  %v717 = vpop.permute.xlu0 %716
  %v719 = vadd.f32 %v709, %v717
  %v720 = vtanh.pop %v719
  %722 = vrot.lane.b32.xlu0 %v720, 64
  %v723 = vpop.permute.xlu0 %722
  %v725 = vmul.f32 %v703, %v723
  %v726 = vsel %vm180, 3.0, 4.0
  %vm727 = vcmp.gt.f32.partialorder %v310, %v726
  %v728 = vsel %vm727, %v725, 0.0
  %729 = vst.msk [vmem:[#allocation3 + $0x18] sm:$0xff] %vm314, %v728
  %730 = vst.msk [vmem:[#allocation3 + $0x20] sm:$0xff] %vm316, %v728
  %v731 = vsel %vm727, %v725, %v593
  %733 = vrot.lane.b32.xlu0 %v719, 64
  %v734 = vpop.permute.xlu0 %733
  %v736 = vsel %vm727, %v734, %v598
  %v737 = vld [vmem:[#allocation2 + $0x40] sm:$0xff]
  %v738 = vld [vmem:[#allocation2 + $0x48] sm:$0xff]
  %v739 = vld [vmem:[#allocation2 + $0x30] sm:$0xff]
  %v740 = vld [vmem:[#allocation2 + $0x38] sm:$0xff]
  %v741 = vsel %vm178, %v737, %v739
  %v742 = vsel %vm179, %v738, %v740
  %v743 = vld [vmem:[%s4] sm:$0xff]
  %v744 = vld [vmem:[%s4 + $0x8] sm:$0xff]
  %v745 = vld [vmem:[%s4 + $0x10] sm:$0xff]
  %v746 = vld [vmem:[%s4 + $0x18] sm:$0xff]
  %v747 = vld [vmem:[%s4 + $0x20] sm:$0xff]
  %v748 = vld [vmem:[%s4 + $0x28] sm:$0xff]
  %v749 = vld [vmem:[%s4 + $0x30] sm:$0xff]
  %v750 = vld [vmem:[%s4 + $0x38] sm:$0xff]
  %v751 = vld [vmem:[%s4 + $0x40] sm:$0xff]
  %v752 = vld [vmem:[%s4 + $0x48] sm:$0xff]
  %v753 = vld [vmem:[%s4 + $0x50] sm:$0xff]
  %v754 = vld [vmem:[%s4 + $0x58] sm:$0xff]
  %v755 = vld [vmem:[%s4 + $0x60] sm:$0xff]
  %v756 = vld [vmem:[%s4 + $0x68] sm:$0xff]
  %v757 = vld [vmem:[%s4 + $0x70] sm:$0xff]
  %v758 = vld [vmem:[%s4 + $0x78] sm:$0xff]
  %v760 = vsel %vm204, %v731, 0
  %762 = vmatpush.msra.mxu0 0.0
  %763 = vmatpush.msra.mxu0 0.0
  %764 = vmatpush.msra.mxu0 0.0
  %765 = vmatpush.msra.mxu0 0.0
  %766 = vmatpush.msra.mxu0 0.0
  %767 = vmatpush.msra.mxu0 0.0
  %768 = vmatpush.msra.mxu0 0.0
  %769 = vmatpush.msra.mxu0 0.0
  %770 = vmatpush.msra.mxu0 %v757
  %771 = vmatpush.msra.mxu0 %v755
  %772 = vmatpush.msra.mxu0 %v753
  %773 = vmatpush.msra.mxu0 %v751
  %774 = vmatpush.msra.mxu0 %v749
  %775 = vmatpush.msra.mxu0 %v747
  %776 = vmatpush.msra.mxu0 %v745
  %777 = vmatpush.msra.mxu0 %v743
  %778 = vmatmul.f32.gmra.mxu0 %v760
  %v779 = vpop.f32.mrf.mxu0
  %v780 = vadd.f32 0.0, %v779
  %781 = vdwg.mxu0
  %782 = vmatpush.msra.mxu0 0.0
  %783 = vmatpush.msra.mxu0 0.0
  %784 = vmatpush.msra.mxu0 0.0
  %785 = vmatpush.msra.mxu0 0.0
  %786 = vmatpush.msra.mxu0 0.0
  %787 = vmatpush.msra.mxu0 0.0
  %788 = vmatpush.msra.mxu0 0.0
  %789 = vmatpush.msra.mxu0 0.0
  %790 = vmatpush.msra.mxu0 %v758
  %791 = vmatpush.msra.mxu0 %v756
  %792 = vmatpush.msra.mxu0 %v754
  %793 = vmatpush.msra.mxu0 %v752
  %794 = vmatpush.msra.mxu0 %v750
  %795 = vmatpush.msra.mxu0 %v748
  %796 = vmatpush.msra.mxu0 %v746
  %797 = vmatpush.msra.mxu0 %v744
  %798 = vmatmul.f32.gmra.mxu0 %v760
  %v799 = vpop.f32.mrf.mxu0
  %v800 = vadd.f32 0.0, %v799
  %801 = vdwg.mxu0
  %v802 = vadd.f32 %v741, %v780
  %v803 = vadd.f32 %v742, %v800
  %v804 = vxor.u32 %v802, 2147483648
  %v805 = vxor.u32 %v803, 2147483648
  %v806 = vmul.f32 %v804, 1.442695
  %v807 = vpow.pop %v806
  %v808 = vmul.f32 %v805, 1.442695
  %v809 = vpow.pop %v808
  %v810 = vadd.f32 %v807, 1.0
  %v811 = vadd.f32 %v809, 1.0
  %v812 = vrcp.pop %v810
  %v813 = vmul.f32 %v810, %v812
  %v814 = vsub.f32 1.0, %v813
  %v815 = vmul.f32 %v812, %v814
  %v816 = vadd.f32 %v812, %v815
  %vm817 = vweird.f32 %v810
  %vm818 = vweird.f32 %v812
  %vm819 = vmor %vm817, %vm818
  %v820 = vsel %vm819, %v812, %v816
  %v821 = vand.u32 2147483647, %v810
  %vm822 = vcmp.eq.f32.partialorder %v821, 8.507059e+37
  %v823 = vand.u32 %v810, 2147483648
  %v824 = vor.u32 1.1754944e-38, %v823
  %v825 = vsel %vm822, %v824, %v820
  %v826 = vmul.f32 1.0, %v825
  %v827 = vrcp.pop %v811
  %v828 = vmul.f32 %v811, %v827
  %v829 = vsub.f32 1.0, %v828
  %v830 = vmul.f32 %v827, %v829
  %v831 = vadd.f32 %v827, %v830
  %vm832 = vweird.f32 %v811
  %vm833 = vweird.f32 %v827
  %vm834 = vmor %vm832, %vm833
  %v835 = vsel %vm834, %v827, %v831
  %v836 = vand.u32 2147483647, %v811
  %vm837 = vcmp.eq.f32.partialorder %v836, 8.507059e+37
  %v838 = vand.u32 %v811, 2147483648
  %v839 = vor.u32 1.1754944e-38, %v838
  %v840 = vsel %vm837, %v839, %v835
  %v841 = vmul.f32 1.0, %v840
  %v842 = vtanh.pop %v803
  %844 = vrot.lane.b32.xlu0 %v736, 64
  %v845 = vpop.permute.xlu0 %844
  %v847 = vmul.f32 %v826, %v845
  %849 = vrot.lane.b32.xlu0 %v842, 64
  %v850 = vpop.permute.xlu0 %849
  %v852 = vmul.f32 %v826, %v850
  %854 = vrot.lane.b32.xlu0 %v852, 64
  %v855 = vpop.permute.xlu0 %854
  %v857 = vadd.f32 %v847, %v855
  %v858 = vtanh.pop %v857
  %860 = vrot.lane.b32.xlu0 %v858, 64
  %v861 = vpop.permute.xlu0 %860
  %v863 = vmul.f32 %v841, %v861
  %v864 = vsel %vm180, 4.0, 3.0
  %vm865 = vcmp.gt.f32.partialorder %v310, %v864
  %v866 = vsel %vm865, %v863, 0.0
  %867 = vst.msk [vmem:[#allocation3 + $0x20] sm:$0xff] %vm314, %v866
  %868 = vst.msk [vmem:[#allocation3 + $0x18] sm:$0xff] %vm316, %v866
  %v869 = vsel %vm865, %v863, %v731
  %871 = vrot.lane.b32.xlu0 %v857, 64
  %v872 = vpop.permute.xlu0 %871
  %v874 = vsel %vm865, %v872, %v736
  %v875 = vld [vmem:[#allocation2 + $0x50] sm:$0xff]
  %v876 = vld [vmem:[#allocation2 + $0x58] sm:$0xff]
  %v877 = vld [vmem:[#allocation2 + $0x20] sm:$0xff]
  %v878 = vld [vmem:[#allocation2 + $0x28] sm:$0xff]
  %v879 = vsel %vm178, %v875, %v877
  %v880 = vsel %vm179, %v876, %v878
  %v881 = vld [vmem:[%s4] sm:$0xff]
  %v882 = vld [vmem:[%s4 + $0x8] sm:$0xff]
  %v883 = vld [vmem:[%s4 + $0x10] sm:$0xff]
  %v884 = vld [vmem:[%s4 + $0x18] sm:$0xff]
  %v885 = vld [vmem:[%s4 + $0x20] sm:$0xff]
  %v886 = vld [vmem:[%s4 + $0x28] sm:$0xff]
  %v887 = vld [vmem:[%s4 + $0x30] sm:$0xff]
  %v888 = vld [vmem:[%s4 + $0x38] sm:$0xff]
  %v889 = vld [vmem:[%s4 + $0x40] sm:$0xff]
  %v890 = vld [vmem:[%s4 + $0x48] sm:$0xff]
  %v891 = vld [vmem:[%s4 + $0x50] sm:$0xff]
  %v892 = vld [vmem:[%s4 + $0x58] sm:$0xff]
  %v893 = vld [vmem:[%s4 + $0x60] sm:$0xff]
  %v894 = vld [vmem:[%s4 + $0x68] sm:$0xff]
  %v895 = vld [vmem:[%s4 + $0x70] sm:$0xff]
  %v896 = vld [vmem:[%s4 + $0x78] sm:$0xff]
  %v898 = vsel %vm204, %v869, 0
  %900 = vmatpush.msra.mxu0 0.0
  %901 = vmatpush.msra.mxu0 0.0
  %902 = vmatpush.msra.mxu0 0.0
  %903 = vmatpush.msra.mxu0 0.0
  %904 = vmatpush.msra.mxu0 0.0
  %905 = vmatpush.msra.mxu0 0.0
  %906 = vmatpush.msra.mxu0 0.0
  %907 = vmatpush.msra.mxu0 0.0
  %908 = vmatpush.msra.mxu0 %v895
  %909 = vmatpush.msra.mxu0 %v893
  %910 = vmatpush.msra.mxu0 %v891
  %911 = vmatpush.msra.mxu0 %v889
  %912 = vmatpush.msra.mxu0 %v887
  %913 = vmatpush.msra.mxu0 %v885
  %914 = vmatpush.msra.mxu0 %v883
  %915 = vmatpush.msra.mxu0 %v881
  %916 = vmatmul.f32.gmra.mxu0 %v898
  %v917 = vpop.f32.mrf.mxu0
  %v918 = vadd.f32 0.0, %v917
  %919 = vdwg.mxu0
  %920 = vmatpush.msra.mxu0 0.0
  %921 = vmatpush.msra.mxu0 0.0
  %922 = vmatpush.msra.mxu0 0.0
  %923 = vmatpush.msra.mxu0 0.0
  %924 = vmatpush.msra.mxu0 0.0
  %925 = vmatpush.msra.mxu0 0.0
  %926 = vmatpush.msra.mxu0 0.0
  %927 = vmatpush.msra.mxu0 0.0
  %928 = vmatpush.msra.mxu0 %v896
  %929 = vmatpush.msra.mxu0 %v894
  %930 = vmatpush.msra.mxu0 %v892
  %931 = vmatpush.msra.mxu0 %v890
  %932 = vmatpush.msra.mxu0 %v888
  %933 = vmatpush.msra.mxu0 %v886
  %934 = vmatpush.msra.mxu0 %v884
  %935 = vmatpush.msra.mxu0 %v882
  %936 = vmatmul.f32.gmra.mxu0 %v898
  %v937 = vpop.f32.mrf.mxu0
  %v938 = vadd.f32 0.0, %v937
  %939 = vdwg.mxu0
  %v940 = vadd.f32 %v879, %v918
  %v941 = vadd.f32 %v880, %v938
  %v942 = vxor.u32 %v940, 2147483648
  %v943 = vxor.u32 %v941, 2147483648
  %v944 = vmul.f32 %v942, 1.442695
  %v945 = vpow.pop %v944
  %v946 = vmul.f32 %v943, 1.442695
  %v947 = vpow.pop %v946
  %v948 = vadd.f32 %v945, 1.0
  %v949 = vadd.f32 %v947, 1.0
  %v950 = vrcp.pop %v948
  %v951 = vmul.f32 %v948, %v950
  %v952 = vsub.f32 1.0, %v951
  %v953 = vmul.f32 %v950, %v952
  %v954 = vadd.f32 %v950, %v953
  %vm955 = vweird.f32 %v948
  %vm956 = vweird.f32 %v950
  %vm957 = vmor %vm955, %vm956
  %v958 = vsel %vm957, %v950, %v954
  %v959 = vand.u32 2147483647, %v948
  %vm960 = vcmp.eq.f32.partialorder %v959, 8.507059e+37
  %v961 = vand.u32 %v948, 2147483648
  %v962 = vor.u32 1.1754944e-38, %v961
  %v963 = vsel %vm960, %v962, %v958
  %v964 = vmul.f32 1.0, %v963
  %v965 = vrcp.pop %v949
  %v966 = vmul.f32 %v949, %v965
  %v967 = vsub.f32 1.0, %v966
  %v968 = vmul.f32 %v965, %v967
  %v969 = vadd.f32 %v965, %v968
  %vm970 = vweird.f32 %v949
  %vm971 = vweird.f32 %v965
  %vm972 = vmor %vm970, %vm971
  %v973 = vsel %vm972, %v965, %v969
  %v974 = vand.u32 2147483647, %v949
  %vm975 = vcmp.eq.f32.partialorder %v974, 8.507059e+37
  %v976 = vand.u32 %v949, 2147483648
  %v977 = vor.u32 1.1754944e-38, %v976
  %v978 = vsel %vm975, %v977, %v973
  %v979 = vmul.f32 1.0, %v978
  %v980 = vtanh.pop %v941
  %982 = vrot.lane.b32.xlu0 %v874, 64
  %v983 = vpop.permute.xlu0 %982
  %v985 = vmul.f32 %v964, %v983
  %987 = vrot.lane.b32.xlu0 %v980, 64
  %v988 = vpop.permute.xlu0 %987
  %v990 = vmul.f32 %v964, %v988
  %992 = vrot.lane.b32.xlu0 %v990, 64
  %v993 = vpop.permute.xlu0 %992
  %v995 = vadd.f32 %v985, %v993
  %v996 = vtanh.pop %v995
  %998 = vrot.lane.b32.xlu0 %v996, 64
  %v999 = vpop.permute.xlu0 %998
  %v1001 = vmul.f32 %v979, %v999
  %v1002 = vsel %vm180, 5.0, 2.0
  %vm1003 = vcmp.gt.f32.partialorder %v310, %v1002
  %v1004 = vsel %vm1003, %v1001, 0.0
  %1005 = vst.msk [vmem:[#allocation3 + $0x28] sm:$0xff] %vm314, %v1004
  %1006 = vst.msk [vmem:[#allocation3 + $0x10] sm:$0xff] %vm316, %v1004
  %v1007 = vsel %vm1003, %v1001, %v869
  %1009 = vrot.lane.b32.xlu0 %v995, 64
  %v1010 = vpop.permute.xlu0 %1009
  %v1012 = vsel %vm1003, %v1010, %v874
  %v1013 = vld [vmem:[#allocation2 + $0x60] sm:$0xff]
  %v1014 = vld [vmem:[#allocation2 + $0x68] sm:$0xff]
  %v1015 = vld [vmem:[#allocation2 + $0x10] sm:$0xff]
  %v1016 = vld [vmem:[#allocation2 + $0x18] sm:$0xff]
  %v1017 = vsel %vm178, %v1013, %v1015
  %v1018 = vsel %vm179, %v1014, %v1016
  %v1019 = vld [vmem:[%s4] sm:$0xff]
  %v1020 = vld [vmem:[%s4 + $0x8] sm:$0xff]
  %v1021 = vld [vmem:[%s4 + $0x10] sm:$0xff]
  %v1022 = vld [vmem:[%s4 + $0x18] sm:$0xff]
  %v1023 = vld [vmem:[%s4 + $0x20] sm:$0xff]
  %v1024 = vld [vmem:[%s4 + $0x28] sm:$0xff]
  %v1025 = vld [vmem:[%s4 + $0x30] sm:$0xff]
  %v1026 = vld [vmem:[%s4 + $0x38] sm:$0xff]
  %v1027 = vld [vmem:[%s4 + $0x40] sm:$0xff]
  %v1028 = vld [vmem:[%s4 + $0x48] sm:$0xff]
  %v1029 = vld [vmem:[%s4 + $0x50] sm:$0xff]
  %v1030 = vld [vmem:[%s4 + $0x58] sm:$0xff]
  %v1031 = vld [vmem:[%s4 + $0x60] sm:$0xff]
  %v1032 = vld [vmem:[%s4 + $0x68] sm:$0xff]
  %v1033 = vld [vmem:[%s4 + $0x70] sm:$0xff]
  %v1034 = vld [vmem:[%s4 + $0x78] sm:$0xff]
  %v1036 = vsel %vm204, %v1007, 0
  %1038 = vmatpush.msra.mxu0 0.0
  %1039 = vmatpush.msra.mxu0 0.0
  %1040 = vmatpush.msra.mxu0 0.0
  %1041 = vmatpush.msra.mxu0 0.0
  %1042 = vmatpush.msra.mxu0 0.0
  %1043 = vmatpush.msra.mxu0 0.0
  %1044 = vmatpush.msra.mxu0 0.0
  %1045 = vmatpush.msra.mxu0 0.0
  %1046 = vmatpush.msra.mxu0 %v1033
  %1047 = vmatpush.msra.mxu0 %v1031
  %1048 = vmatpush.msra.mxu0 %v1029
  %1049 = vmatpush.msra.mxu0 %v1027
  %1050 = vmatpush.msra.mxu0 %v1025
  %1051 = vmatpush.msra.mxu0 %v1023
  %1052 = vmatpush.msra.mxu0 %v1021
  %1053 = vmatpush.msra.mxu0 %v1019
  %1054 = vmatmul.f32.gmra.mxu0 %v1036
  %v1055 = vpop.f32.mrf.mxu0
  %v1056 = vadd.f32 0.0, %v1055
  %1057 = vdwg.mxu0
  %1058 = vmatpush.msra.mxu0 0.0
  %1059 = vmatpush.msra.mxu0 0.0
  %1060 = vmatpush.msra.mxu0 0.0
  %1061 = vmatpush.msra.mxu0 0.0
  %1062 = vmatpush.msra.mxu0 0.0
  %1063 = vmatpush.msra.mxu0 0.0
  %1064 = vmatpush.msra.mxu0 0.0
  %1065 = vmatpush.msra.mxu0 0.0
  %1066 = vmatpush.msra.mxu0 %v1034
  %1067 = vmatpush.msra.mxu0 %v1032
  %1068 = vmatpush.msra.mxu0 %v1030
  %1069 = vmatpush.msra.mxu0 %v1028
  %1070 = vmatpush.msra.mxu0 %v1026
  %1071 = vmatpush.msra.mxu0 %v1024
  %1072 = vmatpush.msra.mxu0 %v1022
  %1073 = vmatpush.msra.mxu0 %v1020
  %1074 = vmatmul.f32.gmra.mxu0 %v1036
  %v1075 = vpop.f32.mrf.mxu0
  %v1076 = vadd.f32 0.0, %v1075
  %1077 = vdwg.mxu0
  %v1078 = vadd.f32 %v1017, %v1056
  %v1079 = vadd.f32 %v1018, %v1076
  %v1080 = vxor.u32 %v1078, 2147483648
  %v1081 = vxor.u32 %v1079, 2147483648
  %v1082 = vmul.f32 %v1080, 1.442695
  %v1083 = vpow.pop %v1082
  %v1084 = vmul.f32 %v1081, 1.442695
  %v1085 = vpow.pop %v1084
  %v1086 = vadd.f32 %v1083, 1.0
  %v1087 = vadd.f32 %v1085, 1.0
  %v1088 = vrcp.pop %v1086
  %v1089 = vmul.f32 %v1086, %v1088
  %v1090 = vsub.f32 1.0, %v1089
  %v1091 = vmul.f32 %v1088, %v1090
  %v1092 = vadd.f32 %v1088, %v1091
  %vm1093 = vweird.f32 %v1086
  %vm1094 = vweird.f32 %v1088
  %vm1095 = vmor %vm1093, %vm1094
  %v1096 = vsel %vm1095, %v1088, %v1092
  %v1097 = vand.u32 2147483647, %v1086
  %vm1098 = vcmp.eq.f32.partialorder %v1097, 8.507059e+37
  %v1099 = vand.u32 %v1086, 2147483648
  %v1100 = vor.u32 1.1754944e-38, %v1099
  %v1101 = vsel %vm1098, %v1100, %v1096
  %v1102 = vmul.f32 1.0, %v1101
  %v1103 = vrcp.pop %v1087
  %v1104 = vmul.f32 %v1087, %v1103
  %v1105 = vsub.f32 1.0, %v1104
  %v1106 = vmul.f32 %v1103, %v1105
  %v1107 = vadd.f32 %v1103, %v1106
  %vm1108 = vweird.f32 %v1087
  %vm1109 = vweird.f32 %v1103
  %vm1110 = vmor %vm1108, %vm1109
  %v1111 = vsel %vm1110, %v1103, %v1107
  %v1112 = vand.u32 2147483647, %v1087
  %vm1113 = vcmp.eq.f32.partialorder %v1112, 8.507059e+37
  %v1114 = vand.u32 %v1087, 2147483648
  %v1115 = vor.u32 1.1754944e-38, %v1114
  %v1116 = vsel %vm1113, %v1115, %v1111
  %v1117 = vmul.f32 1.0, %v1116
  %v1118 = vtanh.pop %v1079
  %1120 = vrot.lane.b32.xlu0 %v1012, 64
  %v1121 = vpop.permute.xlu0 %1120
  %v1123 = vmul.f32 %v1102, %v1121
  %1125 = vrot.lane.b32.xlu0 %v1118, 64
  %v1126 = vpop.permute.xlu0 %1125
  %v1128 = vmul.f32 %v1102, %v1126
  %1130 = vrot.lane.b32.xlu0 %v1128, 64
  %v1131 = vpop.permute.xlu0 %1130
  %v1133 = vadd.f32 %v1123, %v1131
  %v1134 = vtanh.pop %v1133
  %1136 = vrot.lane.b32.xlu0 %v1134, 64
  %v1137 = vpop.permute.xlu0 %1136
  %v1139 = vmul.f32 %v1117, %v1137
  %v1140 = vsel %vm180, 6.0, 1.0
  %vm1141 = vcmp.gt.f32.partialorder %v310, %v1140
  %v1142 = vsel %vm1141, %v1139, 0.0
  %1143 = vst.msk [vmem:[#allocation3 + $0x30] sm:$0xff] %vm314, %v1142
  %1144 = vst.msk [vmem:[#allocation3 + $0x8] sm:$0xff] %vm316, %v1142
  %v1145 = vsel %vm1141, %v1139, %v1007
  %1147 = vrot.lane.b32.xlu0 %v1133, 64
  %v1148 = vpop.permute.xlu0 %1147
  %v1150 = vsel %vm1141, %v1148, %v1012
  %v1151 = vld [vmem:[#allocation2 + $0x70] sm:$0xff]
  %v1152 = vld [vmem:[#allocation2 + $0x78] sm:$0xff]
  %v1153 = vld [vmem:[#allocation2] sm:$0xff]
  %v1154 = vld [vmem:[#allocation2 + $0x8] sm:$0xff]
  %v1155 = vsel %vm178, %v1151, %v1153
  %v1156 = vsel %vm179, %v1152, %v1154
  %v1157 = vld [vmem:[%s4] sm:$0xff]
  %v1158 = vld [vmem:[%s4 + $0x8] sm:$0xff]
  %v1159 = vld [vmem:[%s4 + $0x10] sm:$0xff]
  %v1160 = vld [vmem:[%s4 + $0x18] sm:$0xff]
  %v1161 = vld [vmem:[%s4 + $0x20] sm:$0xff]
  %v1162 = vld [vmem:[%s4 + $0x28] sm:$0xff]
  %v1163 = vld [vmem:[%s4 + $0x30] sm:$0xff]
  %v1164 = vld [vmem:[%s4 + $0x38] sm:$0xff]
  %v1165 = vld [vmem:[%s4 + $0x40] sm:$0xff]
  %v1166 = vld [vmem:[%s4 + $0x48] sm:$0xff]
  %v1167 = vld [vmem:[%s4 + $0x50] sm:$0xff]
  %v1168 = vld [vmem:[%s4 + $0x58] sm:$0xff]
  %v1169 = vld [vmem:[%s4 + $0x60] sm:$0xff]
  %v1170 = vld [vmem:[%s4 + $0x68] sm:$0xff]
  %v1171 = vld [vmem:[%s4 + $0x70] sm:$0xff]
  %v1172 = vld [vmem:[%s4 + $0x78] sm:$0xff]
  %v1174 = vsel %vm204, %v1145, 0
  %1176 = vmatpush.msra.mxu0 0.0
  %1177 = vmatpush.msra.mxu0 0.0
  %1178 = vmatpush.msra.mxu0 0.0
  %1179 = vmatpush.msra.mxu0 0.0
  %1180 = vmatpush.msra.mxu0 0.0
  %1181 = vmatpush.msra.mxu0 0.0
  %1182 = vmatpush.msra.mxu0 0.0
  %1183 = vmatpush.msra.mxu0 0.0
  %1184 = vmatpush.msra.mxu0 %v1171
  %1185 = vmatpush.msra.mxu0 %v1169
  %1186 = vmatpush.msra.mxu0 %v1167
  %1187 = vmatpush.msra.mxu0 %v1165
  %1188 = vmatpush.msra.mxu0 %v1163
  %1189 = vmatpush.msra.mxu0 %v1161
  %1190 = vmatpush.msra.mxu0 %v1159
  %1191 = vmatpush.msra.mxu0 %v1157
  %1192 = vmatmul.f32.gmra.mxu0 %v1174
  %v1193 = vpop.f32.mrf.mxu0
  %v1194 = vadd.f32 0.0, %v1193
  %1195 = vdwg.mxu0
  %1196 = vmatpush.msra.mxu0 0.0
  %1197 = vmatpush.msra.mxu0 0.0
  %1198 = vmatpush.msra.mxu0 0.0
  %1199 = vmatpush.msra.mxu0 0.0
  %1200 = vmatpush.msra.mxu0 0.0
  %1201 = vmatpush.msra.mxu0 0.0
  %1202 = vmatpush.msra.mxu0 0.0
  %1203 = vmatpush.msra.mxu0 0.0
  %1204 = vmatpush.msra.mxu0 %v1172
  %1205 = vmatpush.msra.mxu0 %v1170
  %1206 = vmatpush.msra.mxu0 %v1168
  %1207 = vmatpush.msra.mxu0 %v1166
  %1208 = vmatpush.msra.mxu0 %v1164
  %1209 = vmatpush.msra.mxu0 %v1162
  %1210 = vmatpush.msra.mxu0 %v1160
  %1211 = vmatpush.msra.mxu0 %v1158
  %1212 = vmatmul.f32.gmra.mxu0 %v1174
  %v1213 = vpop.f32.mrf.mxu0
  %v1214 = vadd.f32 0.0, %v1213
  %1215 = vdwg.mxu0
  %v1216 = vadd.f32 %v1155, %v1194
  %v1217 = vadd.f32 %v1156, %v1214
  %v1218 = vxor.u32 %v1216, 2147483648
  %v1219 = vxor.u32 %v1217, 2147483648
  %v1220 = vmul.f32 %v1218, 1.442695
  %v1221 = vpow.pop %v1220
  %v1222 = vmul.f32 %v1219, 1.442695
  %v1223 = vpow.pop %v1222
  %v1224 = vadd.f32 %v1221, 1.0
  %v1225 = vadd.f32 %v1223, 1.0
  %v1226 = vrcp.pop %v1224
  %v1227 = vmul.f32 %v1224, %v1226
  %v1228 = vsub.f32 1.0, %v1227
  %v1229 = vmul.f32 %v1226, %v1228
  %v1230 = vadd.f32 %v1226, %v1229
  %vm1231 = vweird.f32 %v1224
  %vm1232 = vweird.f32 %v1226
  %vm1233 = vmor %vm1231, %vm1232
  %v1234 = vsel %vm1233, %v1226, %v1230
  %v1235 = vand.u32 2147483647, %v1224
  %vm1236 = vcmp.eq.f32.partialorder %v1235, 8.507059e+37
  %v1237 = vand.u32 %v1224, 2147483648
  %v1238 = vor.u32 1.1754944e-38, %v1237
  %v1239 = vsel %vm1236, %v1238, %v1234
  %v1240 = vmul.f32 1.0, %v1239
  %v1241 = vrcp.pop %v1225
  %v1242 = vmul.f32 %v1225, %v1241
  %v1243 = vsub.f32 1.0, %v1242
  %v1244 = vmul.f32 %v1241, %v1243
  %v1245 = vadd.f32 %v1241, %v1244
  %vm1246 = vweird.f32 %v1225
  %vm1247 = vweird.f32 %v1241
  %vm1248 = vmor %vm1246, %vm1247
  %v1249 = vsel %vm1248, %v1241, %v1245
  %v1250 = vand.u32 2147483647, %v1225
  %vm1251 = vcmp.eq.f32.partialorder %v1250, 8.507059e+37
  %v1252 = vand.u32 %v1225, 2147483648
  %v1253 = vor.u32 1.1754944e-38, %v1252
  %v1254 = vsel %vm1251, %v1253, %v1249
  %v1255 = vmul.f32 1.0, %v1254
  %v1256 = vtanh.pop %v1217
  %1258 = vrot.lane.b32.xlu0 %v1150, 64
  %v1259 = vpop.permute.xlu0 %1258
  %v1261 = vmul.f32 %v1240, %v1259
  %1263 = vrot.lane.b32.xlu0 %v1256, 64
  %v1264 = vpop.permute.xlu0 %1263
  %v1266 = vmul.f32 %v1240, %v1264
  %1268 = vrot.lane.b32.xlu0 %v1266, 64
  %v1269 = vpop.permute.xlu0 %1268
  %v1271 = vadd.f32 %v1261, %v1269
  %v1272 = vtanh.pop %v1271
  %1274 = vrot.lane.b32.xlu0 %v1272, 64
  %v1275 = vpop.permute.xlu0 %1274
  %v1277 = vmul.f32 %v1255, %v1275
  %v1278 = vsel %vm180, 7.0, 0.0
  %vm1279 = vcmp.gt.f32.partialorder %v310, %v1278
  %v1280 = vsel %vm1279, %v1277, 0.0
  %1281 = vst.msk [vmem:[#allocation3 + $0x38] sm:$0xff] %vm314, %v1280
  %1282 = vst.msk [vmem:[#allocation3] sm:$0xff] %vm316, %v1280
  %v1283 = vld [vmem:[#allocation3] sm:$0xff]
  %v1284 = vld [vmem:[#allocation3 + $0x8] sm:$0xff]
  %v1285 = vld [vmem:[#allocation3 + $0x10] sm:$0xff]
  %v1286 = vld [vmem:[#allocation3 + $0x18] sm:$0xff]
  %v1287 = vld [vmem:[#allocation3 + $0x20] sm:$0xff]
  %v1288 = vld [vmem:[#allocation3 + $0x28] sm:$0xff]
  %v1289 = vld [vmem:[#allocation3 + $0x30] sm:$0xff]
  %v1290 = vld [vmem:[#allocation3 + $0x38] sm:$0xff]
  %v1291 = vld [vmem:[%s5] sm:$0xff]
  %v1292 = vld [vmem:[%s5 + $0x8] sm:$0xff]
  %v1293 = vld [vmem:[%s5 + $0x10] sm:$0xff]
  %v1294 = vld [vmem:[%s5 + $0x18] sm:$0xff]
  %v1295 = vld [vmem:[%s5 + $0x20] sm:$0xff]
  %v1296 = vld [vmem:[%s5 + $0x28] sm:$0xff]
  %v1297 = vld [vmem:[%s5 + $0x30] sm:$0xff]
  %v1298 = vld [vmem:[%s5 + $0x38] sm:$0xff]
  %v1299 = vld [vmem:[%s6] sm:$0x1]
  %v1301 = vperm.slane %v1299, 0
  %v1304 = vsel %vm204, %v1283, 0
  %v1307 = vsel %vm204, %v1284, 0
  %v1310 = vsel %vm204, %v1285, 0
  %v1313 = vsel %vm204, %v1286, 0
  %v1316 = vsel %vm204, %v1287, 0
  %v1319 = vsel %vm204, %v1288, 0
  %v1322 = vsel %vm204, %v1289, 0
  %v1325 = vsel %vm204, %v1290, 0
  %1327 = vmatpush.msra.mxu0 0.0
  %1328 = vmatpush.msra.mxu0 0.0
  %1329 = vmatpush.msra.mxu0 0.0
  %1330 = vmatpush.msra.mxu0 0.0
  %1331 = vmatpush.msra.mxu0 0.0
  %1332 = vmatpush.msra.mxu0 0.0
  %1333 = vmatpush.msra.mxu0 0.0
  %1334 = vmatpush.msra.mxu0 0.0
  %1335 = vmatpush.msra.mxu0 %v1298
  %1336 = vmatpush.msra.mxu0 %v1297
  %1337 = vmatpush.msra.mxu0 %v1296
  %1338 = vmatpush.msra.mxu0 %v1295
  %1339 = vmatpush.msra.mxu0 %v1294
  %1340 = vmatpush.msra.mxu0 %v1293
  %1341 = vmatpush.msra.mxu0 %v1292
  %1342 = vmatpush.msra.mxu0 %v1291
  %1343 = vmatmul.f32.gmra.mxu0 %v1304
  %v1344 = vpop.f32.mrf.mxu0
  %v1345 = vadd.f32 %v1301, %v1344
  %1346 = vmatmul.f32.gmra.mxu0 %v1307
  %v1347 = vpop.f32.mrf.mxu0
  %v1348 = vadd.f32 %v1301, %v1347
  %1349 = vmatmul.f32.gmra.mxu0 %v1310
  %v1350 = vpop.f32.mrf.mxu0
  %v1351 = vadd.f32 %v1301, %v1350
  %1352 = vmatmul.f32.gmra.mxu0 %v1313
  %v1353 = vpop.f32.mrf.mxu0
  %v1354 = vadd.f32 %v1301, %v1353
  %1355 = vmatmul.f32.gmra.mxu0 %v1316
  %v1356 = vpop.f32.mrf.mxu0
  %v1357 = vadd.f32 %v1301, %v1356
  %1358 = vmatmul.f32.gmra.mxu0 %v1319
  %v1359 = vpop.f32.mrf.mxu0
  %v1360 = vadd.f32 %v1301, %v1359
  %1361 = vmatmul.f32.gmra.mxu0 %v1322
  %v1362 = vpop.f32.mrf.mxu0
  %v1363 = vadd.f32 %v1301, %v1362
  %1364 = vmatmul.f32.gmra.mxu0 %v1325
  %v1365 = vpop.f32.mrf.mxu0
  %v1366 = vadd.f32 %v1301, %v1365
  %1367 = vdwg.mxu0
  %v1368 = vmax.f32 %v1345, 0.0
  %v1369 = vmax.f32 %v1348, 0.0
  %v1370 = vmax.f32 %v1351, 0.0
  %v1371 = vmax.f32 %v1354, 0.0
  %v1372 = vmax.f32 %v1357, 0.0
  %v1373 = vmax.f32 %v1360, 0.0
  %v1374 = vmax.f32 %v1363, 0.0
  %v1375 = vmax.f32 %v1366, 0.0
  %v1376 = vld [vmem:[%s7] sm:$0xff]
  %v1377 = vld [vmem:[%s7 + $0x8] sm:$0xff]
  %v1378 = vld [vmem:[%s7 + $0x10] sm:$0xff]
  %v1379 = vld [vmem:[%s7 + $0x18] sm:$0xff]
  %v1380 = vld [vmem:[%s8] sm:$0x1]
  %v1382 = vperm.slane %v1380, 0
  %v1385 = vsel %vm314, %v1368, 0
  %v1388 = vsel %vm314, %v1369, 0
  %v1391 = vsel %vm314, %v1370, 0
  %v1394 = vsel %vm314, %v1371, 0
  %v1397 = vsel %vm314, %v1372, 0
  %v1400 = vsel %vm314, %v1373, 0
  %v1403 = vsel %vm314, %v1374, 0
  %v1406 = vsel %vm314, %v1375, 0
  %1408 = vmatpush.msra.mxu0 0.0
  %1409 = vmatpush.msra.mxu0 0.0
  %1410 = vmatpush.msra.mxu0 0.0
  %1411 = vmatpush.msra.mxu0 0.0
  %1412 = vmatpush.msra.mxu0 0.0
  %1413 = vmatpush.msra.mxu0 0.0
  %1414 = vmatpush.msra.mxu0 0.0
  %1415 = vmatpush.msra.mxu0 0.0
  %1416 = vmatpush.msra.mxu0 0.0
  %1417 = vmatpush.msra.mxu0 0.0
  %1418 = vmatpush.msra.mxu0 0.0
  %1419 = vmatpush.msra.mxu0 0.0
  %1420 = vmatpush.msra.mxu0 %v1379
  %1421 = vmatpush.msra.mxu0 %v1378
  %1422 = vmatpush.msra.mxu0 %v1377
  %1423 = vmatpush.msra.mxu0 %v1376
  %1424 = vmatmul.f32.gmra.mxu0 %v1385
  %v1425 = vpop.f32.mrf.mxu0
  %v1426 = vadd.f32 %v1382, %v1425
  %1427 = vmatmul.f32.gmra.mxu0 %v1388
  %v1428 = vpop.f32.mrf.mxu0
  %v1429 = vadd.f32 %v1382, %v1428
  %1430 = vmatmul.f32.gmra.mxu0 %v1391
  %v1431 = vpop.f32.mrf.mxu0
  %v1432 = vadd.f32 %v1382, %v1431
  %1433 = vmatmul.f32.gmra.mxu0 %v1394
  %v1434 = vpop.f32.mrf.mxu0
  %v1435 = vadd.f32 %v1382, %v1434
  %1436 = vmatmul.f32.gmra.mxu0 %v1397
  %v1437 = vpop.f32.mrf.mxu0
  %v1438 = vadd.f32 %v1382, %v1437
  %1439 = vmatmul.f32.gmra.mxu0 %v1400
  %v1440 = vpop.f32.mrf.mxu0
  %v1441 = vadd.f32 %v1382, %v1440
  %1442 = vmatmul.f32.gmra.mxu0 %v1403
  %v1443 = vpop.f32.mrf.mxu0
  %v1444 = vadd.f32 %v1382, %v1443
  %1445 = vmatmul.f32.gmra.mxu0 %v1406
  %v1446 = vpop.f32.mrf.mxu0
  %v1447 = vadd.f32 %v1382, %v1446
  %1448 = vdwg.mxu0
  %1449 = vst [vmem:[%s9] sm:$0xff] %v1426
  %1450 = vst [vmem:[%s9 + $0x8] sm:$0xff] %v1429
  %1451 = vst [vmem:[%s9 + $0x10] sm:$0xff] %v1432
  %1452 = vst [vmem:[%s9 + $0x18] sm:$0xff] %v1435
  %1453 = vst [vmem:[%s9 + $0x20] sm:$0xff] %v1438
  %1454 = vst [vmem:[%s9 + $0x28] sm:$0xff] %v1441
  %1455 = vst [vmem:[%s9 + $0x30] sm:$0xff] %v1444
  %1456 = vst [vmem:[%s9 + $0x38] sm:$0xff] %v1447
  // Predicated region
  $region38: #{model_forward.1} parent=0 // pred_check
    _
  $region39: #{model_forward.1} parent=0 // pred_check_branch
    %1458 = sbr.rel (0) target = $region41
  $region40: #{model_forward.1} parent=0 // pred_region
    _
  $region41: #{model_forward.1} parent=0 // pred_fallthru
    _
  // Predicated region
  $region42: #{model_forward.1} parent=0 // pred_check
    _
  $region43: #{model_forward.1} parent=0 // pred_check_branch
    %1460 = sbr.rel (0) target = $region45
  $region44: #{model_forward.1} parent=0 // pred_region
    _
  $region45: #{model_forward.1} parent=0 // pred_fallthru
    _

</llo_original>
